<compile_context>
chip_gen: v6e
topology: v6e:2x2x1
jax: 0.10.0
libtpu: 0.0.40
codegen_flags: <defaults>
</compile_context>

<pallas_src>
import functools
import math

import numpy as np

import jax
import jax.numpy as jnp
from jax.experimental import pallas as pl
from jax.experimental.pallas import tpu as pltpu

EXPECTED_SR = 16000
ORIG_SR = 48000
GCD = math.gcd(ORIG_SR, EXPECTED_SR)
ORIG = ORIG_SR // GCD          # 3
NEW = EXPECTED_SR // GCD       # 1
LOWPASS_FILTER_WIDTH = 6       # torchaudio defaults
ROLLOFF = 0.99

HALO = 128                     # halo samples (>= 41 - 3 = 38), kept lane aligned
MAX_T_TILE = 512               # output-time tile (lanes); >=512 amortizes grid overhead
MAX_N_TILE = 128               # row tile (sublanes / MXU rows)


def _round_up(x, m):
    return ((x + m - 1) // m) * m


@functools.lru_cache(maxsize=None)
def _sinc_taps():
    """torchaudio._get_sinc_resample_kernel for 48k -> 16k, hann window (numpy f32)."""
    base_freq = NEW * ROLLOFF                                         # 0.99
    width = int(math.ceil(LOWPASS_FILTER_WIDTH * ORIG / base_freq))   # 19
    idx = np.arange(-width, width + ORIG, dtype=np.float32) / np.float32(ORIG)  # (41,)
    t = (np.arange(0, -NEW, -1, dtype=np.float32)[:, None] / np.float32(NEW)) + idx[None, :]
    t = t * np.float32(base_freq)
    t = np.clip(t, -LOWPASS_FILTER_WIDTH, LOWPASS_FILTER_WIDTH)
    window = np.cos(t * np.float32(math.pi / LOWPASS_FILTER_WIDTH / 2.0)) ** 2
    t = t * np.float32(math.pi)
    scale = np.float32(base_freq / ORIG)
    safe_t = np.where(t == 0.0, np.float32(1.0), t)
    kern = np.where(t == 0.0, np.float32(1.0), np.sin(t) / safe_t) * window * scale
    return kern[0].astype(np.float32), width                          # (41,), 19


@functools.lru_cache(maxsize=None)
def _banded_weights(t_tile):
    """Banded matrix W[k, t] = kern[k - 3t] (0 elsewhere), split into (main, halo)."""
    kern, _ = _sinc_taps()
    n_taps = kern.shape[0]                                            # 41
    k = np.arange(ORIG * t_tile + HALO)[:, None]
    t = np.arange(t_tile)[None, :]
    d = k - ORIG * t
    w = np.where((d >= 0) & (d < n_taps), kern[np.clip(d, 0, n_taps - 1)], 0.0)
    w = w.astype(np.float32)
    return w[: ORIG * t_tile], w[ORIG * t_tile:]                      # (3T, T), (HALO, T)


def _resample_kernel(x_ref, h_ref, wm_ref, wh_ref, o_ref):
    # x_ref : (N_TILE, 3*T_TILE)  contiguous padded samples of this output tile
    # h_ref : (N_TILE, HALO)      first HALO samples of the *next* tile (halo)
    # wm_ref: (3*T_TILE, T_TILE)  banded sinc weights (grid-constant, stays in VMEM)
    # wh_ref: (HALO, T_TILE)      halo part of the banded weights
    # o_ref : (N_TILE, T_TILE)    resampled output tile (lane dense, 128-multiple)
    acc = jnp.dot(x_ref[...], wm_ref[...],
                  preferred_element_type=jnp.float32,
                  precision=jax.lax.Precision.HIGHEST)
    acc = acc + jnp.dot(h_ref[...], wh_ref[...],
                        preferred_element_type=jnp.float32,
                        precision=jax.lax.Precision.HIGHEST)
    o_ref[...] = acc


@jax.jit
def _resample_48k_to_16k(waveform):
    shape = waveform.shape
    length = shape[-1]
    x = waveform.reshape(-1, length).astype(jnp.float32)
    n_rows = x.shape[0]

    _, width = _sinc_taps()
    l_out = -(-(NEW * length) // ORIG)                 # ceil(L/3), torchaudio target_length

    t_tile = min(MAX_T_TILE, _round_up(l_out, 128))    # output-time tile (multiple of 128)
    l_out_pad = _round_up(l_out, t_tile)
    n_tile = min(MAX_N_TILE, _round_up(n_rows, 8))     # row tile (multiple of 8)
    n_pad = _round_up(n_rows, n_tile)

    # torchaudio pads `width` zeros on the left; pad the right (and extra rows) with
    # zeros up to the tiled extent 3*l_out_pad + HALO so every (main, halo) block is
    # in bounds.  Extra zeros only affect output columns >= l_out, which are sliced off.
    p_len = ORIG * l_out_pad + HALO
    padded = jnp.pad(x, ((0, n_pad - n_rows), (width, p_len - width - length)))

    w_main_np, w_halo_np = _banded_weights(t_tile)
    w_main = jnp.asarray(w_main_np)
    w_halo = jnp.asarray(w_halo_np)

    halo_step = (ORIG * t_tile) // HALO                # halo block-index stride

    out = pl.pallas_call(
        _resample_kernel,
        out_shape=jax.ShapeDtypeStruct((n_pad, l_out_pad), jnp.float32),
        grid=(n_pad // n_tile, l_out_pad // t_tile),
        in_specs=[
            # main input slab: samples [3*T_TILE*j, 3*T_TILE*(j+1))
            pl.BlockSpec((n_tile, ORIG * t_tile), lambda i, j: (i, j)),
            # halo: first HALO samples of the next slab
            pl.BlockSpec((n_tile, HALO), lambda i, j: (i, (j + 1) * halo_step)),
            # banded weights: constant block index -> fetched once, resident in VMEM
            pl.BlockSpec((ORIG * t_tile, t_tile), lambda i, j: (0, 0)),
            pl.BlockSpec((HALO, t_tile), lambda i, j: (0, 0)),
        ],
        out_specs=pl.BlockSpec((n_tile, t_tile), lambda i, j: (i, j)),
        compiler_params=pltpu.CompilerParams(
            dimension_semantics=("parallel", "parallel")),
    )(padded, padded, w_main, w_halo)

    out = out[:n_rows, :l_out]
    return out.reshape(shape[:-1] + (l_out,))


def my_resampler_forward(waveform, waveform_rate, expected_sample_rate=EXPECTED_SR):
    """Mirrors MyResampler.forward. `waveform_rate` is a host-side Python int."""
    if waveform_rate == expected_sample_rate:
        return waveform, waveform.shape[-1], expected_sample_rate
    if waveform_rate != ORIG_SR:
        raise KeyError(waveform_rate)  # same behavior as the dict lookup in torch
    resampled = _resample_48k_to_16k(waveform)
    return resampled, resampled.shape[-1], expected_sample_rate


def _reference_resample(waveform):
    """Pure-JAX reference of the torchaudio conv1d path (sanity check)."""
    shape = waveform.shape
    length = shape[-1]
    x = waveform.reshape(-1, length).astype(jnp.float32)
    kern_np, width = _sinc_taps()
    kern = jnp.asarray(kern_np)
    l_out = -(-(NEW * length) // ORIG)
    padded = jnp.pad(x, ((0, 0), (width, width + ORIG)))
    idxs = ORIG * jnp.arange(l_out)[:, None] + jnp.arange(kern.shape[0])[None, :]
    ref = (padded[:, idxs] * kern[None, None, :]).sum(-1)
    return ref.reshape(shape[:-1] + (l_out,))


if __name__ == "__main__":
    key = jax.random.PRNGKey(0)
    # small shapes: batch=2, channels=4, time=384 samples @ 48 kHz
    waveform = jax.random.normal(key, (2, 4, 384), dtype=jnp.float32)

    # resampling path (48 kHz -> 16 kHz)
    out, out_len, sr = my_resampler_forward(waveform, 48000)
    out = jax.block_until_ready(out)
    assert out.shape == (2, 4, 128) and out_len == 128 and sr == 16000

    ref = _reference_resample(waveform)
    assert jnp.allclose(out, ref, atol=1e-4, rtol=1e-4), "mismatch vs reference"

    # ragged length: exercises row padding + output-column padding/slicing
    wav2 = jax.random.normal(jax.random.PRNGKey(1), (1, 2, 1000), dtype=jnp.float32)
    out2, out2_len, _ = my_resampler_forward(wav2, 48000)
    out2 = jax.block_until_ready(out2)
    assert out2.shape == (1, 2, 334) and out2_len == 334
    ref2 = _reference_resample(wav2)
    assert jnp.allclose(out2, ref2, atol=1e-4, rtol=1e-4), "mismatch vs reference (padded path)"

    # identity path (already 16 kHz)
    same, same_len, sr2 = my_resampler_forward(waveform, 16000)
    same = jax.block_until_ready(same)
    assert same.shape == waveform.shape and same_len == waveform.shape[-1] and sr2 == 16000

    print("KERNEL_OK")
</pallas_src>

<mosaic_0001>
module attributes {stable_mosaic.version = 11 : i64} {
  func.func @_resample_kernel(%arg0: i32, %arg1: i32, %arg2: memref<8x384xf32, #tpu.memory_space<vmem>>, %arg3: memref<8x128xf32, #tpu.memory_space<vmem>>, %arg4: memref<384x128xf32, #tpu.memory_space<vmem>>, %arg5: memref<128x128xf32, #tpu.memory_space<vmem>>, %arg6: memref<8x128xf32, #tpu.memory_space<vmem>>) attributes {dimension_semantics = [#tpu.dimension_semantics<parallel>, #tpu.dimension_semantics<parallel>], iteration_bounds = array<i64: 1, 1>, scalar_prefetch = 0 : i64, scratch_operands = 0 : i64, tpu.core_type = #tpu.core_type<tc>, window_params = [{transform_indices = @transform_0, window_bounds = array<i64: 8, 384>}, {transform_indices = @transform_1, window_bounds = array<i64: 8, 128>}, {pipeline_mode = #tpu.pipeline_mode<synchronous>, transform_indices = @transform_2, window_bounds = array<i64: 384, 128>}, {pipeline_mode = #tpu.pipeline_mode<synchronous>, transform_indices = @transform_3, window_bounds = array<i64: 128, 128>}, {transform_indices = @transform_4, window_bounds = array<i64: 8, 128>}]} {
    %c0 = arith.constant 0 : index
    %c0_0 = arith.constant 0 : index
    %0 = vector.load %arg2[%c0, %c0_0] : memref<8x384xf32, #tpu.memory_space<vmem>>, vector<8x384xf32>
    %c0_1 = arith.constant 0 : index
    %c0_2 = arith.constant 0 : index
    %1 = vector.load %arg4[%c0_1, %c0_2] : memref<384x128xf32, #tpu.memory_space<vmem>>, vector<384x128xf32>
    %cst = arith.constant dense<0.000000e+00> : vector<8x128xf32>
    %2 = tpu.matmul %0, %1, %cst {dimension_numbers = #tpu.dot_dimension_numbers<[1], [0], [0], [1], [0, 0, 1, 1], [], []>, precision = #tpu.contract_precision<fp32>} : vector<8x384xf32>, vector<384x128xf32>, vector<8x128xf32> -> vector<8x128xf32>
    %c0_3 = arith.constant 0 : index
    %c0_4 = arith.constant 0 : index
    %3 = vector.load %arg3[%c0_3, %c0_4] : memref<8x128xf32, #tpu.memory_space<vmem>>, vector<8x128xf32>
    %c0_5 = arith.constant 0 : index
    %c0_6 = arith.constant 0 : index
    %4 = vector.load %arg5[%c0_5, %c0_6] : memref<128x128xf32, #tpu.memory_space<vmem>>, vector<128x128xf32>
    %cst_7 = arith.constant dense<0.000000e+00> : vector<8x128xf32>
    %5 = tpu.matmul %3, %4, %cst_7 {dimension_numbers = #tpu.dot_dimension_numbers<[1], [0], [0], [1], [0, 0, 1, 1], [], []>, precision = #tpu.contract_precision<fp32>} : vector<8x128xf32>, vector<128x128xf32>, vector<8x128xf32> -> vector<8x128xf32>
    %6 = arith.addf %2, %5 : vector<8x128xf32>
    %c0_8 = arith.constant 0 : index
    %c0_9 = arith.constant 0 : index
    %7 = vector.load %arg6[%c0_8, %c0_9] : memref<8x128xf32, #tpu.memory_space<vmem>>, vector<8x128xf32>
    tpu.vector_store %arg6[%c0_8, %c0_9], %6 {strides = array<i32>} : memref<8x128xf32, #tpu.memory_space<vmem>>, vector<8x128xf32>,
    return
  }
  func.func @transform_0(%arg0: i32, %arg1: i32) -> (i32, i32) {
    %c0_i32 = arith.constant 0 : i32
    return %arg0, %arg1 : i32, i32
  }
  func.func @transform_1(%arg0: i32, %arg1: i32) -> (i32, i32) {
    %c1_i32 = arith.constant 1 : i32
    %0 = arith.addi %arg1, %c1_i32 : i32
    %c3_i32 = arith.constant 3 : i32
    %1 = arith.muli %0, %c3_i32 : i32
    %c0_i32 = arith.constant 0 : i32
    return %arg0, %1 : i32, i32
  }
  func.func @transform_2(%arg0: i32, %arg1: i32) -> (i32, i32) {
    %c0_i32 = arith.constant 0 : i32
    %c0_i32_0 = arith.constant 0 : i32
    %c0_i32_1 = arith.constant 0 : i32
    return %c0_i32, %c0_i32_0 : i32, i32
  }
  func.func @transform_3(%arg0: i32, %arg1: i32) -> (i32, i32) {
    %c0_i32 = arith.constant 0 : i32
    %c0_i32_0 = arith.constant 0 : i32
    %c0_i32_1 = arith.constant 0 : i32
    return %c0_i32, %c0_i32_0 : i32, i32
  }
  func.func @transform_4(%arg0: i32, %arg1: i32) -> (i32, i32) {
    %c0_i32 = arith.constant 0 : i32
    return %arg0, %arg1 : i32, i32
  }
}

</mosaic_0001>

<llo_original>
// kernel: _resample_48k_to_16k.1
$region0: #{_resample_48k_to_16k.1}
  #allocation0 [shape = 'u32[]', space=smem, size = 0x4, offset = 0x4, fixed_abs, tag = 'smem constant byte address 0x4 - core index']
  #allocation1 [shape = 'u32[144,128]{1,0:T(1,128)}', space=vmem, size = 0x12000, scoped, tag = 'internal scratch']
  %s0 = inlined_call_operand.vmem [shape: f32[8,512], index: 0, kind: input, shape index: {}, may-alias: {0,1}]
  %s1 = inlined_call_operand.vmem [shape: f32[8,512], index: 1, kind: input, shape index: {}, may-alias: {0,1}]
  %s2 = inlined_call_operand.hbm [shape: f32[384,128], index: 2, kind: input, shape index: {}]
  %s3 = inlined_call_operand.hbm [shape: f32[128,128], index: 3, kind: input, shape index: {}]
  %s4 = inlined_call_operand.hbm [shape: f32[8,128], index: 4, kind: output, shape index: {}]
  %s5 = sld [smem:[#allocation0]]
  $region34: #{_resample_48k_to_16k.1} parent=0
    _
  %s7 = ssub.s32 1, %s5
  %s8 = scalar_select 0, %s7, %s5
  $region1: #{_resample_48k_to_16k.1} parent=0
    #allocation2 [shape = 'u8[196608]{0}', space=vmem, size = 0x30000, scoped, tag = 'input window, operand 2, single buffered']
    #allocation3 [shape = 's32[1]{0}', space=sflag, size = 0x4, scoped, tag = 'scoped memory for _resample_48k_to_16k.1']
    #allocation4 [shape = 's32[1]{0}', space=sflag, size = 0x4, scoped, tag = 'scoped memory for _resample_48k_to_16k.1']
    #allocation5 [shape = 'u8[65536]{0}', space=vmem, size = 0x10000, scoped, tag = 'input window, operand 3, single buffered']
    #allocation6 [shape = 's32[1]{0}', space=sflag, size = 0x4, scoped, tag = 'scoped memory for _resample_48k_to_16k.1']
    #allocation7 [shape = 'u8[4096]{0}', space=vmem, size = 0x1000, scoped, tag = 'output window, operand 0, single buffered']
    %9 = vsyncpa [#allocation3], 0
    %10 = vsyncpa [#allocation6], 0
    %11 = vsyncpa [#allocation4], 0
    // Predicated region
    $region2: #{_resample_48k_to_16k.1} parent=1 // pred_check
      _
    $region3: #{_resample_48k_to_16k.1} parent=1 // pred_check_branch
      %13 = sbr.rel (0) target = $region5
    $region4: #{_resample_48k_to_16k.1} parent=1 // pred_region
      _
    $region5: #{_resample_48k_to_16k.1} parent=1 // pred_fallthru
      _
    // Predicated region
    $region6: #{_resample_48k_to_16k.1} parent=1 // pred_check
      _
    $region7: #{_resample_48k_to_16k.1} parent=1 // pred_check_branch
      %15 = sbr.rel (0) target = $region9
    $region8: #{_resample_48k_to_16k.1} parent=1 // pred_region
      %s16 = sadd.s32 0, 1
      %s17 = smul.u32 %s16, 3
      %p18 = scmp.lt.s32.totalorder %s17, 3
      %s19 = scalar_select %p18, %s17, 3
      %s20 = smul.addr %s19, 8
      %s21 = scalar_lea.vmem %s1, %s20
      %s22 = sadd.s32 0, 1
      %s23 = smul.u32 %s22, 3
    $region9: #{_resample_48k_to_16k.1} parent=1 // pred_fallthru
      _
    // Predicated region
    $region10: #{_resample_48k_to_16k.1} parent=1 // pred_check
      _
    $region11: #{_resample_48k_to_16k.1} parent=1 // pred_check_branch
      %25 = sbr.rel (0) target = $region13
    $region12: #{_resample_48k_to_16k.1} parent=1 // pred_region
      %s27 = ssub.s32 6144, 6144
      %28 = vsyncadd [#allocation3], %s27
      %s29 = sshll.u32 [#allocation2], 4
      %s30 = int_to_ptr.vmem [resolvable:$true] %s29
      %35 = dma.hbm_to_vmem [thread:$0]  %s2, 6144, %s30, [#allocation3], 128, 128, 8
    $region13: #{_resample_48k_to_16k.1} parent=1 // pred_fallthru
      _
    // Predicated region
    $region14: #{_resample_48k_to_16k.1} parent=1 // pred_check
      _
    $region15: #{_resample_48k_to_16k.1} parent=1 // pred_check_branch
      %37 = sbr.rel (0) target = $region17
    $region16: #{_resample_48k_to_16k.1} parent=1 // pred_region
      %s39 = ssub.s32 2048, 2048
      %40 = vsyncadd [#allocation6], %s39
      %s41 = sshll.u32 [#allocation5], 4
      %s42 = int_to_ptr.vmem [resolvable:$true] %s41
      %47 = dma.hbm_to_vmem [thread:$0]  %s3, 2048, %s42, [#allocation6], 128, 128, 8
    $region17: #{_resample_48k_to_16k.1} parent=1 // pred_fallthru
      _
    // Predicated region
    $region18: #{_resample_48k_to_16k.1} parent=1 // pred_check
      _
    $region19: #{_resample_48k_to_16k.1} parent=1 // pred_check_branch
      %49 = sbr.rel (0) target = $region21
    $region20: #{_resample_48k_to_16k.1} parent=1 // pred_region
      %50 = dma.done [#allocation3], 6144
    $region21: #{_resample_48k_to_16k.1} parent=1 // pred_fallthru
      _
    // Predicated region
    $region22: #{_resample_48k_to_16k.1} parent=1 // pred_check
      _
    $region23: #{_resample_48k_to_16k.1} parent=1 // pred_check_branch
      %52 = sbr.rel (0) target = $region25
    $region24: #{_resample_48k_to_16k.1} parent=1 // pred_region
      %53 = dma.done [#allocation6], 2048
    $region25: #{_resample_48k_to_16k.1} parent=1 // pred_fallthru
      _
    %s54 = sadd.s32 0, 1
    %s55 = smul.u32 %s54, 3
    %p56 = scmp.lt.s32.totalorder %s55, 3
    %s57 = scalar_select %p56, %s55, 3
    %s58 = smul.addr %s57, 8
    %s59 = scalar_lea.vmem %s1, %s58
    %s60 = sadd.s32 0, 1
    %s61 = smul.u32 %s60, 3
    %p62 = scmp.lt.s32.totalorder %s61, 3
    %s63 = scalar_select %p62, %s61, 3
    %s64 = smul.addr %s63, 8
    %s65 = scalar_lea.vmem %s1, %s64
    %s66 = sadd.s32 0, 1
    %s67 = smul.u32 %s66, 3
    %v68 = vld [vmem:[%s0] sm:$0xff]
    %v69 = vld [vmem:[%s0 + $0x8] sm:$0xff]
    %v70 = vld [vmem:[%s0 + $0x10] sm:$0xff]
    %v71 = vld [vmem:[#allocation2] sm:$0xff]
    %v72 = vld [vmem:[#allocation2 + $0x8] sm:$0xff]
    %v73 = vld [vmem:[#allocation2 + $0x10] sm:$0xff]
    %v74 = vld [vmem:[#allocation2 + $0x18] sm:$0xff]
    %v75 = vld [vmem:[#allocation2 + $0x20] sm:$0xff]
    %v76 = vld [vmem:[#allocation2 + $0x28] sm:$0xff]
    %v77 = vld [vmem:[#allocation2 + $0x30] sm:$0xff]
    %v78 = vld [vmem:[#allocation2 + $0x38] sm:$0xff]
    %v79 = vld [vmem:[#allocation2 + $0x40] sm:$0xff]
    %v80 = vld [vmem:[#allocation2 + $0x48] sm:$0xff]
    %v81 = vld [vmem:[#allocation2 + $0x50] sm:$0xff]
    %v82 = vld [vmem:[#allocation2 + $0x58] sm:$0xff]
    %v83 = vld [vmem:[#allocation2 + $0x60] sm:$0xff]
    %v84 = vld [vmem:[#allocation2 + $0x68] sm:$0xff]
    %v85 = vld [vmem:[#allocation2 + $0x70] sm:$0xff]
    %v86 = vld [vmem:[#allocation2 + $0x78] sm:$0xff]
    %v87 = vld [vmem:[#allocation2 + $0x80] sm:$0xff]
    %v88 = vld [vmem:[#allocation2 + $0x88] sm:$0xff]
    %v89 = vld [vmem:[#allocation2 + $0x90] sm:$0xff]
    %v90 = vld [vmem:[#allocation2 + $0x98] sm:$0xff]
    %v91 = vld [vmem:[#allocation2 + $0xa0] sm:$0xff]
    %v92 = vld [vmem:[#allocation2 + $0xa8] sm:$0xff]
    %v93 = vld [vmem:[#allocation2 + $0xb0] sm:$0xff]
    %v94 = vld [vmem:[#allocation2 + $0xb8] sm:$0xff]
    %v95 = vld [vmem:[#allocation2 + $0xc0] sm:$0xff]
    %v96 = vld [vmem:[#allocation2 + $0xc8] sm:$0xff]
    %v97 = vld [vmem:[#allocation2 + $0xd0] sm:$0xff]
    %v98 = vld [vmem:[#allocation2 + $0xd8] sm:$0xff]
    %v99 = vld [vmem:[#allocation2 + $0xe0] sm:$0xff]
    %v100 = vld [vmem:[#allocation2 + $0xe8] sm:$0xff]
    %v101 = vld [vmem:[#allocation2 + $0xf0] sm:$0xff]
    %v102 = vld [vmem:[#allocation2 + $0xf8] sm:$0xff]
    %v103 = vld [vmem:[#allocation2 + $0x100] sm:$0xff]
    %v104 = vld [vmem:[#allocation2 + $0x108] sm:$0xff]
    %v105 = vld [vmem:[#allocation2 + $0x110] sm:$0xff]
    %v106 = vld [vmem:[#allocation2 + $0x118] sm:$0xff]
    %v107 = vld [vmem:[#allocation2 + $0x120] sm:$0xff]
    %v108 = vld [vmem:[#allocation2 + $0x128] sm:$0xff]
    %v109 = vld [vmem:[#allocation2 + $0x130] sm:$0xff]
    %v110 = vld [vmem:[#allocation2 + $0x138] sm:$0xff]
    %v111 = vld [vmem:[#allocation2 + $0x140] sm:$0xff]
    %v112 = vld [vmem:[#allocation2 + $0x148] sm:$0xff]
    %v113 = vld [vmem:[#allocation2 + $0x150] sm:$0xff]
    %v114 = vld [vmem:[#allocation2 + $0x158] sm:$0xff]
    %v115 = vld [vmem:[#allocation2 + $0x160] sm:$0xff]
    %v116 = vld [vmem:[#allocation2 + $0x168] sm:$0xff]
    %v117 = vld [vmem:[#allocation2 + $0x170] sm:$0xff]
    %v118 = vld [vmem:[#allocation2 + $0x178] sm:$0xff]
    %v119 = vld [vmem:[%s65] sm:$0xff]
    %v120 = vld [vmem:[#allocation5] sm:$0xff]
    %v121 = vld [vmem:[#allocation5 + $0x8] sm:$0xff]
    %v122 = vld [vmem:[#allocation5 + $0x10] sm:$0xff]
    %v123 = vld [vmem:[#allocation5 + $0x18] sm:$0xff]
    %v124 = vld [vmem:[#allocation5 + $0x20] sm:$0xff]
    %v125 = vld [vmem:[#allocation5 + $0x28] sm:$0xff]
    %v126 = vld [vmem:[#allocation5 + $0x30] sm:$0xff]
    %v127 = vld [vmem:[#allocation5 + $0x38] sm:$0xff]
    %v128 = vld [vmem:[#allocation5 + $0x40] sm:$0xff]
    %v129 = vld [vmem:[#allocation5 + $0x48] sm:$0xff]
    %v130 = vld [vmem:[#allocation5 + $0x50] sm:$0xff]
    %v131 = vld [vmem:[#allocation5 + $0x58] sm:$0xff]
    %v132 = vld [vmem:[#allocation5 + $0x60] sm:$0xff]
    %v133 = vld [vmem:[#allocation5 + $0x68] sm:$0xff]
    %v134 = vld [vmem:[#allocation5 + $0x70] sm:$0xff]
    %v135 = vld [vmem:[#allocation5 + $0x78] sm:$0xff]
    %136 = vmatprep.subr.mxu0 0.0
    %v137 = vand.u32 %v135, 4294901760
    %138 = vmatpush1.msra.mxu0 %v137
    %139 = vmatprep.subr.mxu0 0.0
    %v140 = vand.u32 %v134, 4294901760
    %141 = vmatpush1.msra.mxu0 %v140
    %142 = vmatprep.subr.mxu0 0.0
    %v143 = vand.u32 %v133, 4294901760
    %144 = vmatpush1.msra.mxu0 %v143
    %145 = vmatprep.subr.mxu0 0.0
    %v146 = vand.u32 %v132, 4294901760
    %147 = vmatpush1.msra.mxu0 %v146
    %148 = vmatprep.subr.mxu0 0.0
    %v149 = vand.u32 %v131, 4294901760
    %150 = vmatpush1.msra.mxu0 %v149
    %151 = vmatprep.subr.mxu0 0.0
    %v152 = vand.u32 %v130, 4294901760
    %153 = vmatpush1.msra.mxu0 %v152
    %154 = vmatprep.subr.mxu0 0.0
    %v155 = vand.u32 %v129, 4294901760
    %156 = vmatpush1.msra.mxu0 %v155
    %157 = vmatprep.subr.mxu0 0.0
    %v158 = vand.u32 %v128, 4294901760
    %159 = vmatpush1.msra.mxu0 %v158
    %160 = vmatprep.subr.mxu0 0.0
    %v161 = vand.u32 %v127, 4294901760
    %162 = vmatpush1.msra.mxu0 %v161
    %163 = vmatprep.subr.mxu0 0.0
    %v164 = vand.u32 %v126, 4294901760
    %165 = vmatpush1.msra.mxu0 %v164
    %166 = vmatprep.subr.mxu0 0.0
    %v167 = vand.u32 %v125, 4294901760
    %168 = vmatpush1.msra.mxu0 %v167
    %169 = vmatprep.subr.mxu0 0.0
    %v170 = vand.u32 %v124, 4294901760
    %171 = vmatpush1.msra.mxu0 %v170
    %172 = vmatprep.subr.mxu0 0.0
    %v173 = vand.u32 %v123, 4294901760
    %174 = vmatpush1.msra.mxu0 %v173
    %175 = vmatprep.subr.mxu0 0.0
    %v176 = vand.u32 %v122, 4294901760
    %177 = vmatpush1.msra.mxu0 %v176
    %178 = vmatprep.subr.mxu0 0.0
    %v179 = vand.u32 %v121, 4294901760
    %180 = vmatpush1.msra.mxu0 %v179
    %181 = vmatprep.subr.mxu0 0.0
    %v182 = vand.u32 %v120, 4294901760
    %183 = vmatpush1.msra.mxu0 %v182
    %184 = vmatprep.subr.mxu0 0.0
    %185 = vmatpush2.msra.mxu0 0.0
    %186 = vmatprep.subr.mxu0 0.0
    %187 = vmatpush2.msra.mxu0 0.0
    %188 = vmatprep.subr.mxu0 0.0
    %189 = vmatpush2.msra.mxu0 0.0
    %190 = vmatprep.subr.mxu0 0.0
    %191 = vmatpush2.msra.mxu0 0.0
    %192 = vmatprep.subr.mxu0 0.0
    %193 = vmatpush2.msra.mxu0 0.0
    %194 = vmatprep.subr.mxu0 0.0
    %195 = vmatpush2.msra.mxu0 0.0
    %196 = vmatprep.subr.mxu0 0.0
    %197 = vmatpush2.msra.mxu0 0.0
    %198 = vmatprep.subr.mxu0 0.0
    %199 = vmatpush2.msra.mxu0 0.0
    %200 = vmatprep.subr.mxu0 0.0
    %201 = vmatpush2.msra.mxu0 0.0
    %202 = vmatprep.subr.mxu0 0.0
    %203 = vmatpush2.msra.mxu0 0.0
    %204 = vmatprep.subr.mxu0 0.0
    %205 = vmatpush2.msra.mxu0 0.0
    %206 = vmatprep.subr.mxu0 0.0
    %207 = vmatpush2.msra.mxu0 0.0
    %208 = vmatprep.subr.mxu0 0.0
    %209 = vmatpush2.msra.mxu0 0.0
    %210 = vmatprep.subr.mxu0 0.0
    %211 = vmatpush2.msra.mxu0 0.0
    %212 = vmatprep.subr.mxu0 0.0
    %213 = vmatpush2.msra.mxu0 0.0
    %214 = vmatprep.subr.mxu0 0.0
    %215 = vmatpush2.msra.mxu0 0.0
    %216 = vmatprep.mubr.f32.mxu0 0.0
    %v217 = vand.u32 %v119, 4294901760
    %v218 = vsub.f32 %v119, %v217
    %v219 = vand.u32 %v218, 4294901760
    %v220 = vsub.f32 %v218, %v219
    %v221 = vand.u32 %v220, 4294901760
    %222 = vmatmul.mubr.f32.gmra.mxu0 %v221
    %v223 = vpop.f32.mrf.mxu0
    %v224 = vadd.f32 0.0, %v223
    %v225 = vpop.f32.mrf.mxu0
    %226 = vdwg.mxu0
    %227 = vmatprep.subr.mxu0 0.0
    %v228 = vand.u32 %v135, 4294901760
    %v229 = vsub.f32 %v135, %v228
    %v230 = vand.u32 %v229, 4294901760
    %v231 = vsub.f32 %v229, %v230
    %v232 = vand.u32 %v231, 4294901760
    %233 = vmatpush1.msra.mxu0 %v232
    %234 = vmatprep.subr.mxu0 0.0
    %v235 = vand.u32 %v134, 4294901760
    %v236 = vsub.f32 %v134, %v235
    %v237 = vand.u32 %v236, 4294901760
    %v238 = vsub.f32 %v236, %v237
    %v239 = vand.u32 %v238, 4294901760
    %240 = vmatpush1.msra.mxu0 %v239
    %241 = vmatprep.subr.mxu0 0.0
    %v242 = vand.u32 %v133, 4294901760
    %v243 = vsub.f32 %v133, %v242
    %v244 = vand.u32 %v243, 4294901760
    %v245 = vsub.f32 %v243, %v244
    %v246 = vand.u32 %v245, 4294901760
    %247 = vmatpush1.msra.mxu0 %v246
    %248 = vmatprep.subr.mxu0 0.0
    %v249 = vand.u32 %v132, 4294901760
    %v250 = vsub.f32 %v132, %v249
    %v251 = vand.u32 %v250, 4294901760
    %v252 = vsub.f32 %v250, %v251
    %v253 = vand.u32 %v252, 4294901760
    %254 = vmatpush1.msra.mxu0 %v253
    %255 = vmatprep.subr.mxu0 0.0
    %v256 = vand.u32 %v131, 4294901760
    %v257 = vsub.f32 %v131, %v256
    %v258 = vand.u32 %v257, 4294901760
    %v259 = vsub.f32 %v257, %v258
    %v260 = vand.u32 %v259, 4294901760
    %261 = vmatpush1.msra.mxu0 %v260
    %262 = vmatprep.subr.mxu0 0.0
    %v263 = vand.u32 %v130, 4294901760
    %v264 = vsub.f32 %v130, %v263
    %v265 = vand.u32 %v264, 4294901760
    %v266 = vsub.f32 %v264, %v265
    %v267 = vand.u32 %v266, 4294901760
    %268 = vmatpush1.msra.mxu0 %v267
    %269 = vmatprep.subr.mxu0 0.0
    %v270 = vand.u32 %v129, 4294901760
    %v271 = vsub.f32 %v129, %v270
    %v272 = vand.u32 %v271, 4294901760
    %v273 = vsub.f32 %v271, %v272
    %v274 = vand.u32 %v273, 4294901760
    %275 = vmatpush1.msra.mxu0 %v274
    %276 = vmatprep.subr.mxu0 0.0
    %v277 = vand.u32 %v128, 4294901760
    %v278 = vsub.f32 %v128, %v277
    %v279 = vand.u32 %v278, 4294901760
    %v280 = vsub.f32 %v278, %v279
    %v281 = vand.u32 %v280, 4294901760
    %282 = vmatpush1.msra.mxu0 %v281
    %283 = vmatprep.subr.mxu0 0.0
    %v284 = vand.u32 %v127, 4294901760
    %v285 = vsub.f32 %v127, %v284
    %v286 = vand.u32 %v285, 4294901760
    %v287 = vsub.f32 %v285, %v286
    %v288 = vand.u32 %v287, 4294901760
    %289 = vmatpush1.msra.mxu0 %v288
    %290 = vmatprep.subr.mxu0 0.0
    %v291 = vand.u32 %v126, 4294901760
    %v292 = vsub.f32 %v126, %v291
    %v293 = vand.u32 %v292, 4294901760
    %v294 = vsub.f32 %v292, %v293
    %v295 = vand.u32 %v294, 4294901760
    %296 = vmatpush1.msra.mxu0 %v295
    %297 = vmatprep.subr.mxu0 0.0
    %v298 = vand.u32 %v125, 4294901760
    %v299 = vsub.f32 %v125, %v298
    %v300 = vand.u32 %v299, 4294901760
    %v301 = vsub.f32 %v299, %v300
    %v302 = vand.u32 %v301, 4294901760
    %303 = vmatpush1.msra.mxu0 %v302
    %304 = vmatprep.subr.mxu0 0.0
    %v305 = vand.u32 %v124, 4294901760
    %v306 = vsub.f32 %v124, %v305
    %v307 = vand.u32 %v306, 4294901760
    %v308 = vsub.f32 %v306, %v307
    %v309 = vand.u32 %v308, 4294901760
    %310 = vmatpush1.msra.mxu0 %v309
    %311 = vmatprep.subr.mxu0 0.0
    %v312 = vand.u32 %v123, 4294901760
    %v313 = vsub.f32 %v123, %v312
    %v314 = vand.u32 %v313, 4294901760
    %v315 = vsub.f32 %v313, %v314
    %v316 = vand.u32 %v315, 4294901760
    %317 = vmatpush1.msra.mxu0 %v316
    %318 = vmatprep.subr.mxu0 0.0
    %v319 = vand.u32 %v122, 4294901760
    %v320 = vsub.f32 %v122, %v319
    %v321 = vand.u32 %v320, 4294901760
    %v322 = vsub.f32 %v320, %v321
    %v323 = vand.u32 %v322, 4294901760
    %324 = vmatpush1.msra.mxu0 %v323
    %325 = vmatprep.subr.mxu0 0.0
    %v326 = vand.u32 %v121, 4294901760
    %v327 = vsub.f32 %v121, %v326
    %v328 = vand.u32 %v327, 4294901760
    %v329 = vsub.f32 %v327, %v328
    %v330 = vand.u32 %v329, 4294901760
    %331 = vmatpush1.msra.mxu0 %v330
    %332 = vmatprep.subr.mxu0 0.0
    %v333 = vand.u32 %v120, 4294901760
    %v334 = vsub.f32 %v120, %v333
    %v335 = vand.u32 %v334, 4294901760
    %v336 = vsub.f32 %v334, %v335
    %v337 = vand.u32 %v336, 4294901760
    %338 = vmatpush1.msra.mxu0 %v337
    %339 = vmatprep.subr.mxu0 0.0
    %340 = vmatpush2.msra.mxu0 0.0
    %341 = vmatprep.subr.mxu0 0.0
    %342 = vmatpush2.msra.mxu0 0.0
    %343 = vmatprep.subr.mxu0 0.0
    %344 = vmatpush2.msra.mxu0 0.0
    %345 = vmatprep.subr.mxu0 0.0
    %346 = vmatpush2.msra.mxu0 0.0
    %347 = vmatprep.subr.mxu0 0.0
    %348 = vmatpush2.msra.mxu0 0.0
    %349 = vmatprep.subr.mxu0 0.0
    %350 = vmatpush2.msra.mxu0 0.0
    %351 = vmatprep.subr.mxu0 0.0
    %352 = vmatpush2.msra.mxu0 0.0
    %353 = vmatprep.subr.mxu0 0.0
    %354 = vmatpush2.msra.mxu0 0.0
    %355 = vmatprep.subr.mxu0 0.0
    %356 = vmatpush2.msra.mxu0 0.0
    %357 = vmatprep.subr.mxu0 0.0
    %358 = vmatpush2.msra.mxu0 0.0
    %359 = vmatprep.subr.mxu0 0.0
    %360 = vmatpush2.msra.mxu0 0.0
    %361 = vmatprep.subr.mxu0 0.0
    %362 = vmatpush2.msra.mxu0 0.0
    %363 = vmatprep.subr.mxu0 0.0
    %364 = vmatpush2.msra.mxu0 0.0
    %365 = vmatprep.subr.mxu0 0.0
    %366 = vmatpush2.msra.mxu0 0.0
    %367 = vmatprep.subr.mxu0 0.0
    %368 = vmatpush2.msra.mxu0 0.0
    %369 = vmatprep.subr.mxu0 0.0
    %370 = vmatpush2.msra.mxu0 0.0
    %371 = vmatprep.mubr.f32.mxu0 0.0
    %v372 = vand.u32 %v119, 4294901760
    %373 = vmatmul.mubr.f32.gmra.mxu0 %v372
    %v374 = vpop.f32.mrf.mxu0
    %v375 = vadd.f32 %v224, %v374
    %v376 = vpop.f32.mrf.mxu0
    %377 = vdwg.mxu0
    %378 = vmatprep.subr.mxu0 0.0
    %v379 = vand.u32 %v135, 4294901760
    %v380 = vsub.f32 %v135, %v379
    %381 = vmatpush1.msra.mxu0 %v380
    %382 = vmatprep.subr.mxu0 0.0
    %v383 = vand.u32 %v134, 4294901760
    %v384 = vsub.f32 %v134, %v383
    %385 = vmatpush1.msra.mxu0 %v384
    %386 = vmatprep.subr.mxu0 0.0
    %v387 = vand.u32 %v133, 4294901760
    %v388 = vsub.f32 %v133, %v387
    %389 = vmatpush1.msra.mxu0 %v388
    %390 = vmatprep.subr.mxu0 0.0
    %v391 = vand.u32 %v132, 4294901760
    %v392 = vsub.f32 %v132, %v391
    %393 = vmatpush1.msra.mxu0 %v392
    %394 = vmatprep.subr.mxu0 0.0
    %v395 = vand.u32 %v131, 4294901760
    %v396 = vsub.f32 %v131, %v395
    %397 = vmatpush1.msra.mxu0 %v396
    %398 = vmatprep.subr.mxu0 0.0
    %v399 = vand.u32 %v130, 4294901760
    %v400 = vsub.f32 %v130, %v399
    %401 = vmatpush1.msra.mxu0 %v400
    %402 = vmatprep.subr.mxu0 0.0
    %v403 = vand.u32 %v129, 4294901760
    %v404 = vsub.f32 %v129, %v403
    %405 = vmatpush1.msra.mxu0 %v404
    %406 = vmatprep.subr.mxu0 0.0
    %v407 = vand.u32 %v128, 4294901760
    %v408 = vsub.f32 %v128, %v407
    %409 = vmatpush1.msra.mxu0 %v408
    %410 = vmatprep.subr.mxu0 0.0
    %v411 = vand.u32 %v127, 4294901760
    %v412 = vsub.f32 %v127, %v411
    %413 = vmatpush1.msra.mxu0 %v412
    %414 = vmatprep.subr.mxu0 0.0
    %v415 = vand.u32 %v126, 4294901760
    %v416 = vsub.f32 %v126, %v415
    %417 = vmatpush1.msra.mxu0 %v416
    %418 = vmatprep.subr.mxu0 0.0
    %v419 = vand.u32 %v125, 4294901760
    %v420 = vsub.f32 %v125, %v419
    %421 = vmatpush1.msra.mxu0 %v420
    %422 = vmatprep.subr.mxu0 0.0
    %v423 = vand.u32 %v124, 4294901760
    %v424 = vsub.f32 %v124, %v423
    %425 = vmatpush1.msra.mxu0 %v424
    %426 = vmatprep.subr.mxu0 0.0
    %v427 = vand.u32 %v123, 4294901760
    %v428 = vsub.f32 %v123, %v427
    %429 = vmatpush1.msra.mxu0 %v428
    %430 = vmatprep.subr.mxu0 0.0
    %v431 = vand.u32 %v122, 4294901760
    %v432 = vsub.f32 %v122, %v431
    %433 = vmatpush1.msra.mxu0 %v432
    %434 = vmatprep.subr.mxu0 0.0
    %v435 = vand.u32 %v121, 4294901760
    %v436 = vsub.f32 %v121, %v435
    %437 = vmatpush1.msra.mxu0 %v436
    %438 = vmatprep.subr.mxu0 0.0
    %v439 = vand.u32 %v120, 4294901760
    %v440 = vsub.f32 %v120, %v439
    %441 = vmatpush1.msra.mxu0 %v440
    %442 = vmatprep.subr.mxu0 0.0
    %443 = vmatpush2.msra.mxu0 0.0
    %444 = vmatprep.subr.mxu0 0.0
    %445 = vmatpush2.msra.mxu0 0.0
    %446 = vmatprep.subr.mxu0 0.0
    %447 = vmatpush2.msra.mxu0 0.0
    %448 = vmatprep.subr.mxu0 0.0
    %449 = vmatpush2.msra.mxu0 0.0
    %450 = vmatprep.subr.mxu0 0.0
    %451 = vmatpush2.msra.mxu0 0.0
    %452 = vmatprep.subr.mxu0 0.0
    %453 = vmatpush2.msra.mxu0 0.0
    %454 = vmatprep.subr.mxu0 0.0
    %455 = vmatpush2.msra.mxu0 0.0
    %456 = vmatprep.subr.mxu0 0.0
    %457 = vmatpush2.msra.mxu0 0.0
    %458 = vmatprep.subr.mxu0 0.0
    %459 = vmatpush2.msra.mxu0 0.0
    %460 = vmatprep.subr.mxu0 0.0
    %461 = vmatpush2.msra.mxu0 0.0
    %462 = vmatprep.subr.mxu0 0.0
    %463 = vmatpush2.msra.mxu0 0.0
    %464 = vmatprep.subr.mxu0 0.0
    %465 = vmatpush2.msra.mxu0 0.0
    %466 = vmatprep.subr.mxu0 0.0
    %467 = vmatpush2.msra.mxu0 0.0
    %468 = vmatprep.subr.mxu0 0.0
    %469 = vmatpush2.msra.mxu0 0.0
    %470 = vmatprep.subr.mxu0 0.0
    %471 = vmatpush2.msra.mxu0 0.0
    %472 = vmatprep.subr.mxu0 0.0
    %473 = vmatpush2.msra.mxu0 0.0
    %474 = vmatprep.mubr.f32.mxu0 0.0
    %v475 = vand.u32 %v119, 4294901760
    %v476 = vsub.f32 %v119, %v475
    %477 = vmatmul.mubr.f32.gmra.mxu0 %v476
    %v478 = vpop.f32.mrf.mxu0
    %v479 = vadd.f32 %v375, %v478
    %v480 = vpop.f32.mrf.mxu0
    %481 = vdwg.mxu0
    %482 = vmatprep.subr.mxu0 0.0
    %v483 = vand.u32 %v135, 4294901760
    %484 = vmatpush1.msra.mxu0 %v483
    %485 = vmatprep.subr.mxu0 0.0
    %v486 = vand.u32 %v134, 4294901760
    %487 = vmatpush1.msra.mxu0 %v486
    %488 = vmatprep.subr.mxu0 0.0
    %v489 = vand.u32 %v133, 4294901760
    %490 = vmatpush1.msra.mxu0 %v489
    %491 = vmatprep.subr.mxu0 0.0
    %v492 = vand.u32 %v132, 4294901760
    %493 = vmatpush1.msra.mxu0 %v492
    %494 = vmatprep.subr.mxu0 0.0
    %v495 = vand.u32 %v131, 4294901760
    %496 = vmatpush1.msra.mxu0 %v495
    %497 = vmatprep.subr.mxu0 0.0
    %v498 = vand.u32 %v130, 4294901760
    %499 = vmatpush1.msra.mxu0 %v498
    %500 = vmatprep.subr.mxu0 0.0
    %v501 = vand.u32 %v129, 4294901760
    %502 = vmatpush1.msra.mxu0 %v501
    %503 = vmatprep.subr.mxu0 0.0
    %v504 = vand.u32 %v128, 4294901760
    %505 = vmatpush1.msra.mxu0 %v504
    %506 = vmatprep.subr.mxu0 0.0
    %v507 = vand.u32 %v127, 4294901760
    %508 = vmatpush1.msra.mxu0 %v507
    %509 = vmatprep.subr.mxu0 0.0
    %v510 = vand.u32 %v126, 4294901760
    %511 = vmatpush1.msra.mxu0 %v510
    %512 = vmatprep.subr.mxu0 0.0
    %v513 = vand.u32 %v125, 4294901760
    %514 = vmatpush1.msra.mxu0 %v513
    %515 = vmatprep.subr.mxu0 0.0
    %v516 = vand.u32 %v124, 4294901760
    %517 = vmatpush1.msra.mxu0 %v516
    %518 = vmatprep.subr.mxu0 0.0
    %v519 = vand.u32 %v123, 4294901760
    %520 = vmatpush1.msra.mxu0 %v519
    %521 = vmatprep.subr.mxu0 0.0
    %v522 = vand.u32 %v122, 4294901760
    %523 = vmatpush1.msra.mxu0 %v522
    %524 = vmatprep.subr.mxu0 0.0
    %v525 = vand.u32 %v121, 4294901760
    %526 = vmatpush1.msra.mxu0 %v525
    %527 = vmatprep.subr.mxu0 0.0
    %v528 = vand.u32 %v120, 4294901760
    %529 = vmatpush1.msra.mxu0 %v528
    %530 = vmatprep.subr.mxu0 0.0
    %531 = vmatpush2.msra.mxu0 0.0
    %532 = vmatprep.subr.mxu0 0.0
    %533 = vmatpush2.msra.mxu0 0.0
    %534 = vmatprep.subr.mxu0 0.0
    %535 = vmatpush2.msra.mxu0 0.0
    %536 = vmatprep.subr.mxu0 0.0
    %537 = vmatpush2.msra.mxu0 0.0
    %538 = vmatprep.subr.mxu0 0.0
    %539 = vmatpush2.msra.mxu0 0.0
    %540 = vmatprep.subr.mxu0 0.0
    %541 = vmatpush2.msra.mxu0 0.0
    %542 = vmatprep.subr.mxu0 0.0
    %543 = vmatpush2.msra.mxu0 0.0
    %544 = vmatprep.subr.mxu0 0.0
    %545 = vmatpush2.msra.mxu0 0.0
    %546 = vmatprep.subr.mxu0 0.0
    %547 = vmatpush2.msra.mxu0 0.0
    %548 = vmatprep.subr.mxu0 0.0
    %549 = vmatpush2.msra.mxu0 0.0
    %550 = vmatprep.subr.mxu0 0.0
    %551 = vmatpush2.msra.mxu0 0.0
    %552 = vmatprep.subr.mxu0 0.0
    %553 = vmatpush2.msra.mxu0 0.0
    %554 = vmatprep.subr.mxu0 0.0
    %555 = vmatpush2.msra.mxu0 0.0
    %556 = vmatprep.subr.mxu0 0.0
    %557 = vmatpush2.msra.mxu0 0.0
    %558 = vmatprep.subr.mxu0 0.0
    %559 = vmatpush2.msra.mxu0 0.0
    %560 = vmatprep.subr.mxu0 0.0
    %561 = vmatpush2.msra.mxu0 0.0
    %562 = vmatprep.mubr.f32.mxu0 0.0
    %v563 = vand.u32 %v119, 4294901760
    %v564 = vsub.f32 %v119, %v563
    %v565 = vand.u32 %v564, 4294901760
    %566 = vmatmul.mubr.f32.gmra.mxu0 %v565
    %v567 = vpop.f32.mrf.mxu0
    %v568 = vadd.f32 %v479, %v567
    %v569 = vpop.f32.mrf.mxu0
    %570 = vdwg.mxu0
    %571 = vmatprep.subr.mxu0 0.0
    %v572 = vand.u32 %v135, 4294901760
    %v573 = vsub.f32 %v135, %v572
    %v574 = vand.u32 %v573, 4294901760
    %575 = vmatpush1.msra.mxu0 %v574
    %576 = vmatprep.subr.mxu0 0.0
    %v577 = vand.u32 %v134, 4294901760
    %v578 = vsub.f32 %v134, %v577
    %v579 = vand.u32 %v578, 4294901760
    %580 = vmatpush1.msra.mxu0 %v579
    %581 = vmatprep.subr.mxu0 0.0
    %v582 = vand.u32 %v133, 4294901760
    %v583 = vsub.f32 %v133, %v582
    %v584 = vand.u32 %v583, 4294901760
    %585 = vmatpush1.msra.mxu0 %v584
    %586 = vmatprep.subr.mxu0 0.0
    %v587 = vand.u32 %v132, 4294901760
    %v588 = vsub.f32 %v132, %v587
    %v589 = vand.u32 %v588, 4294901760
    %590 = vmatpush1.msra.mxu0 %v589
    %591 = vmatprep.subr.mxu0 0.0
    %v592 = vand.u32 %v131, 4294901760
    %v593 = vsub.f32 %v131, %v592
    %v594 = vand.u32 %v593, 4294901760
    %595 = vmatpush1.msra.mxu0 %v594
    %596 = vmatprep.subr.mxu0 0.0
    %v597 = vand.u32 %v130, 4294901760
    %v598 = vsub.f32 %v130, %v597
    %v599 = vand.u32 %v598, 4294901760
    %600 = vmatpush1.msra.mxu0 %v599
    %601 = vmatprep.subr.mxu0 0.0
    %v602 = vand.u32 %v129, 4294901760
    %v603 = vsub.f32 %v129, %v602
    %v604 = vand.u32 %v603, 4294901760
    %605 = vmatpush1.msra.mxu0 %v604
    %606 = vmatprep.subr.mxu0 0.0
    %v607 = vand.u32 %v128, 4294901760
    %v608 = vsub.f32 %v128, %v607
    %v609 = vand.u32 %v608, 4294901760
    %610 = vmatpush1.msra.mxu0 %v609
    %611 = vmatprep.subr.mxu0 0.0
    %v612 = vand.u32 %v127, 4294901760
    %v613 = vsub.f32 %v127, %v612
    %v614 = vand.u32 %v613, 4294901760
    %615 = vmatpush1.msra.mxu0 %v614
    %616 = vmatprep.subr.mxu0 0.0
    %v617 = vand.u32 %v126, 4294901760
    %v618 = vsub.f32 %v126, %v617
    %v619 = vand.u32 %v618, 4294901760
    %620 = vmatpush1.msra.mxu0 %v619
    %621 = vmatprep.subr.mxu0 0.0
    %v622 = vand.u32 %v125, 4294901760
    %v623 = vsub.f32 %v125, %v622
    %v624 = vand.u32 %v623, 4294901760
    %625 = vmatpush1.msra.mxu0 %v624
    %626 = vmatprep.subr.mxu0 0.0
    %v627 = vand.u32 %v124, 4294901760
    %v628 = vsub.f32 %v124, %v627
    %v629 = vand.u32 %v628, 4294901760
    %630 = vmatpush1.msra.mxu0 %v629
    %631 = vmatprep.subr.mxu0 0.0
    %v632 = vand.u32 %v123, 4294901760
    %v633 = vsub.f32 %v123, %v632
    %v634 = vand.u32 %v633, 4294901760
    %635 = vmatpush1.msra.mxu0 %v634
    %636 = vmatprep.subr.mxu0 0.0
    %v637 = vand.u32 %v122, 4294901760
    %v638 = vsub.f32 %v122, %v637
    %v639 = vand.u32 %v638, 4294901760
    %640 = vmatpush1.msra.mxu0 %v639
    %641 = vmatprep.subr.mxu0 0.0
    %v642 = vand.u32 %v121, 4294901760
    %v643 = vsub.f32 %v121, %v642
    %v644 = vand.u32 %v643, 4294901760
    %645 = vmatpush1.msra.mxu0 %v644
    %646 = vmatprep.subr.mxu0 0.0
    %v647 = vand.u32 %v120, 4294901760
    %v648 = vsub.f32 %v120, %v647
    %v649 = vand.u32 %v648, 4294901760
    %650 = vmatpush1.msra.mxu0 %v649
    %651 = vmatprep.subr.mxu0 0.0
    %652 = vmatpush2.msra.mxu0 0.0
    %653 = vmatprep.subr.mxu0 0.0
    %654 = vmatpush2.msra.mxu0 0.0
    %655 = vmatprep.subr.mxu0 0.0
    %656 = vmatpush2.msra.mxu0 0.0
    %657 = vmatprep.subr.mxu0 0.0
    %658 = vmatpush2.msra.mxu0 0.0
    %659 = vmatprep.subr.mxu0 0.0
    %660 = vmatpush2.msra.mxu0 0.0
    %661 = vmatprep.subr.mxu0 0.0
    %662 = vmatpush2.msra.mxu0 0.0
    %663 = vmatprep.subr.mxu0 0.0
    %664 = vmatpush2.msra.mxu0 0.0
    %665 = vmatprep.subr.mxu0 0.0
    %666 = vmatpush2.msra.mxu0 0.0
    %667 = vmatprep.subr.mxu0 0.0
    %668 = vmatpush2.msra.mxu0 0.0
    %669 = vmatprep.subr.mxu0 0.0
    %670 = vmatpush2.msra.mxu0 0.0
    %671 = vmatprep.subr.mxu0 0.0
    %672 = vmatpush2.msra.mxu0 0.0
    %673 = vmatprep.subr.mxu0 0.0
    %674 = vmatpush2.msra.mxu0 0.0
    %675 = vmatprep.subr.mxu0 0.0
    %676 = vmatpush2.msra.mxu0 0.0
    %677 = vmatprep.subr.mxu0 0.0
    %678 = vmatpush2.msra.mxu0 0.0
    %679 = vmatprep.subr.mxu0 0.0
    %680 = vmatpush2.msra.mxu0 0.0
    %681 = vmatprep.subr.mxu0 0.0
    %682 = vmatpush2.msra.mxu0 0.0
    %683 = vmatprep.mubr.f32.mxu0 0.0
    %v684 = vand.u32 %v119, 4294901760
    %685 = vmatmul.mubr.f32.gmra.mxu0 %v684
    %v686 = vpop.f32.mrf.mxu0
    %v687 = vadd.f32 %v568, %v686
    %v688 = vpop.f32.mrf.mxu0
    %689 = vdwg.mxu0
    %690 = vmatprep.subr.mxu0 0.0
    %v691 = vand.u32 %v135, 4294901760
    %692 = vmatpush1.msra.mxu0 %v691
    %693 = vmatprep.subr.mxu0 0.0
    %v694 = vand.u32 %v134, 4294901760
    %695 = vmatpush1.msra.mxu0 %v694
    %696 = vmatprep.subr.mxu0 0.0
    %v697 = vand.u32 %v133, 4294901760
    %698 = vmatpush1.msra.mxu0 %v697
    %699 = vmatprep.subr.mxu0 0.0
    %v700 = vand.u32 %v132, 4294901760
    %701 = vmatpush1.msra.mxu0 %v700
    %702 = vmatprep.subr.mxu0 0.0
    %v703 = vand.u32 %v131, 4294901760
    %704 = vmatpush1.msra.mxu0 %v703
    %705 = vmatprep.subr.mxu0 0.0
    %v706 = vand.u32 %v130, 4294901760
    %707 = vmatpush1.msra.mxu0 %v706
    %708 = vmatprep.subr.mxu0 0.0
    %v709 = vand.u32 %v129, 4294901760
    %710 = vmatpush1.msra.mxu0 %v709
    %711 = vmatprep.subr.mxu0 0.0
    %v712 = vand.u32 %v128, 4294901760
    %713 = vmatpush1.msra.mxu0 %v712
    %714 = vmatprep.subr.mxu0 0.0
    %v715 = vand.u32 %v127, 4294901760
    %716 = vmatpush1.msra.mxu0 %v715
    %717 = vmatprep.subr.mxu0 0.0
    %v718 = vand.u32 %v126, 4294901760
    %719 = vmatpush1.msra.mxu0 %v718
    %720 = vmatprep.subr.mxu0 0.0
    %v721 = vand.u32 %v125, 4294901760
    %722 = vmatpush1.msra.mxu0 %v721
    %723 = vmatprep.subr.mxu0 0.0
    %v724 = vand.u32 %v124, 4294901760
    %725 = vmatpush1.msra.mxu0 %v724
    %726 = vmatprep.subr.mxu0 0.0
    %v727 = vand.u32 %v123, 4294901760
    %728 = vmatpush1.msra.mxu0 %v727
    %729 = vmatprep.subr.mxu0 0.0
    %v730 = vand.u32 %v122, 4294901760
    %731 = vmatpush1.msra.mxu0 %v730
    %732 = vmatprep.subr.mxu0 0.0
    %v733 = vand.u32 %v121, 4294901760
    %734 = vmatpush1.msra.mxu0 %v733
    %735 = vmatprep.subr.mxu0 0.0
    %v736 = vand.u32 %v120, 4294901760
    %737 = vmatpush1.msra.mxu0 %v736
    %738 = vmatprep.subr.mxu0 0.0
    %739 = vmatpush2.msra.mxu0 0.0
    %740 = vmatprep.subr.mxu0 0.0
    %741 = vmatpush2.msra.mxu0 0.0
    %742 = vmatprep.subr.mxu0 0.0
    %743 = vmatpush2.msra.mxu0 0.0
    %744 = vmatprep.subr.mxu0 0.0
    %745 = vmatpush2.msra.mxu0 0.0
    %746 = vmatprep.subr.mxu0 0.0
    %747 = vmatpush2.msra.mxu0 0.0
    %748 = vmatprep.subr.mxu0 0.0
    %749 = vmatpush2.msra.mxu0 0.0
    %750 = vmatprep.subr.mxu0 0.0
    %751 = vmatpush2.msra.mxu0 0.0
    %752 = vmatprep.subr.mxu0 0.0
    %753 = vmatpush2.msra.mxu0 0.0
    %754 = vmatprep.subr.mxu0 0.0
    %755 = vmatpush2.msra.mxu0 0.0
    %756 = vmatprep.subr.mxu0 0.0
    %757 = vmatpush2.msra.mxu0 0.0
    %758 = vmatprep.subr.mxu0 0.0
    %759 = vmatpush2.msra.mxu0 0.0
    %760 = vmatprep.subr.mxu0 0.0
    %761 = vmatpush2.msra.mxu0 0.0
    %762 = vmatprep.subr.mxu0 0.0
    %763 = vmatpush2.msra.mxu0 0.0
    %764 = vmatprep.subr.mxu0 0.0
    %765 = vmatpush2.msra.mxu0 0.0
    %766 = vmatprep.subr.mxu0 0.0
    %767 = vmatpush2.msra.mxu0 0.0
    %768 = vmatprep.subr.mxu0 0.0
    %769 = vmatpush2.msra.mxu0 0.0
    %770 = vmatprep.mubr.f32.mxu0 0.0
    %v771 = vand.u32 %v119, 4294901760
    %772 = vmatmul.mubr.f32.gmra.mxu0 %v771
    %v773 = vpop.f32.mrf.mxu0
    %v774 = vadd.f32 %v687, %v773
    %v775 = vpop.f32.mrf.mxu0
    %776 = vdwg.mxu0
    %777 = vmatprep.subr.mxu0 0.0
    %v778 = vand.u32 %v86, 4294901760
    %779 = vmatpush1.msra.mxu0 %v778
    %780 = vmatprep.subr.mxu0 0.0
    %v781 = vand.u32 %v85, 4294901760
    %782 = vmatpush1.msra.mxu0 %v781
    %783 = vmatprep.subr.mxu0 0.0
    %v784 = vand.u32 %v84, 4294901760
    %785 = vmatpush1.msra.mxu0 %v784
    %786 = vmatprep.subr.mxu0 0.0
    %v787 = vand.u32 %v83, 4294901760
    %788 = vmatpush1.msra.mxu0 %v787
    %789 = vmatprep.subr.mxu0 0.0
    %v790 = vand.u32 %v82, 4294901760
    %791 = vmatpush1.msra.mxu0 %v790
    %792 = vmatprep.subr.mxu0 0.0
    %v793 = vand.u32 %v81, 4294901760
    %794 = vmatpush1.msra.mxu0 %v793
    %795 = vmatprep.subr.mxu0 0.0
    %v796 = vand.u32 %v80, 4294901760
    %797 = vmatpush1.msra.mxu0 %v796
    %798 = vmatprep.subr.mxu0 0.0
    %v799 = vand.u32 %v79, 4294901760
    %800 = vmatpush1.msra.mxu0 %v799
    %801 = vmatprep.subr.mxu0 0.0
    %v802 = vand.u32 %v78, 4294901760
    %803 = vmatpush1.msra.mxu0 %v802
    %804 = vmatprep.subr.mxu0 0.0
    %v805 = vand.u32 %v77, 4294901760
    %806 = vmatpush1.msra.mxu0 %v805
    %807 = vmatprep.subr.mxu0 0.0
    %v808 = vand.u32 %v76, 4294901760
    %809 = vmatpush1.msra.mxu0 %v808
    %810 = vmatprep.subr.mxu0 0.0
    %v811 = vand.u32 %v75, 4294901760
    %812 = vmatpush1.msra.mxu0 %v811
    %813 = vmatprep.subr.mxu0 0.0
    %v814 = vand.u32 %v74, 4294901760
    %815 = vmatpush1.msra.mxu0 %v814
    %816 = vmatprep.subr.mxu0 0.0
    %v817 = vand.u32 %v73, 4294901760
    %818 = vmatpush1.msra.mxu0 %v817
    %819 = vmatprep.subr.mxu0 0.0
    %v820 = vand.u32 %v72, 4294901760
    %821 = vmatpush1.msra.mxu0 %v820
    %822 = vmatprep.subr.mxu0 0.0
    %v823 = vand.u32 %v71, 4294901760
    %824 = vmatpush1.msra.mxu0 %v823
    %825 = vmatprep.subr.mxu0 0.0
    %v826 = vand.u32 %v102, 4294901760
    %827 = vmatpush2.msra.mxu0 %v826
    %828 = vmatprep.subr.mxu0 0.0
    %v829 = vand.u32 %v101, 4294901760
    %830 = vmatpush2.msra.mxu0 %v829
    %831 = vmatprep.subr.mxu0 0.0
    %v832 = vand.u32 %v100, 4294901760
    %833 = vmatpush2.msra.mxu0 %v832
    %834 = vmatprep.subr.mxu0 0.0
    %v835 = vand.u32 %v99, 4294901760
    %836 = vmatpush2.msra.mxu0 %v835
    %837 = vmatprep.subr.mxu0 0.0
    %v838 = vand.u32 %v98, 4294901760
    %839 = vmatpush2.msra.mxu0 %v838
    %840 = vmatprep.subr.mxu0 0.0
    %v841 = vand.u32 %v97, 4294901760
    %842 = vmatpush2.msra.mxu0 %v841
    %843 = vmatprep.subr.mxu0 0.0
    %v844 = vand.u32 %v96, 4294901760
    %845 = vmatpush2.msra.mxu0 %v844
    %846 = vmatprep.subr.mxu0 0.0
    %v847 = vand.u32 %v95, 4294901760
    %848 = vmatpush2.msra.mxu0 %v847
    %849 = vmatprep.subr.mxu0 0.0
    %v850 = vand.u32 %v94, 4294901760
    %851 = vmatpush2.msra.mxu0 %v850
    %852 = vmatprep.subr.mxu0 0.0
    %v853 = vand.u32 %v93, 4294901760
    %854 = vmatpush2.msra.mxu0 %v853
    %855 = vmatprep.subr.mxu0 0.0
    %v856 = vand.u32 %v92, 4294901760
    %857 = vmatpush2.msra.mxu0 %v856
    %858 = vmatprep.subr.mxu0 0.0
    %v859 = vand.u32 %v91, 4294901760
    %860 = vmatpush2.msra.mxu0 %v859
    %861 = vmatprep.subr.mxu0 0.0
    %v862 = vand.u32 %v90, 4294901760
    %863 = vmatpush2.msra.mxu0 %v862
    %864 = vmatprep.subr.mxu0 0.0
    %v865 = vand.u32 %v89, 4294901760
    %866 = vmatpush2.msra.mxu0 %v865
    %867 = vmatprep.subr.mxu0 0.0
    %v868 = vand.u32 %v88, 4294901760
    %869 = vmatpush2.msra.mxu0 %v868
    %870 = vmatprep.subr.mxu0 0.0
    %v871 = vand.u32 %v87, 4294901760
    %872 = vmatpush2.msra.mxu0 %v871
    %v873 = vand.u32 %v69, 4294901760
    %v874 = vsub.f32 %v69, %v873
    %v875 = vand.u32 %v874, 4294901760
    %v876 = vsub.f32 %v874, %v875
    %v877 = vand.u32 %v876, 4294901760
    %878 = vmatprep.mubr.f32.mxu0 %v877
    %v879 = vand.u32 %v68, 4294901760
    %v880 = vsub.f32 %v68, %v879
    %v881 = vand.u32 %v880, 4294901760
    %v882 = vsub.f32 %v880, %v881
    %v883 = vand.u32 %v882, 4294901760
    %884 = vmatmul.mubr.f32.gmra.mxu0 %v883
    %v885 = vpop.f32.mrf.mxu0
    %v886 = vadd.f32 %v774, %v885
    %v887 = vpop.f32.mrf.mxu0
    %888 = vdwg.mxu0
    %889 = vmatprep.subr.mxu0 0.0
    %v890 = vand.u32 %v86, 4294901760
    %v891 = vsub.f32 %v86, %v890
    %v892 = vand.u32 %v891, 4294901760
    %v893 = vsub.f32 %v891, %v892
    %v894 = vand.u32 %v893, 4294901760
    %895 = vmatpush1.msra.mxu0 %v894
    %896 = vmatprep.subr.mxu0 0.0
    %v897 = vand.u32 %v85, 4294901760
    %v898 = vsub.f32 %v85, %v897
    %v899 = vand.u32 %v898, 4294901760
    %v900 = vsub.f32 %v898, %v899
    %v901 = vand.u32 %v900, 4294901760
    %902 = vmatpush1.msra.mxu0 %v901
    %903 = vmatprep.subr.mxu0 0.0
    %v904 = vand.u32 %v84, 4294901760
    %v905 = vsub.f32 %v84, %v904
    %v906 = vand.u32 %v905, 4294901760
    %v907 = vsub.f32 %v905, %v906
    %v908 = vand.u32 %v907, 4294901760
    %909 = vmatpush1.msra.mxu0 %v908
    %910 = vmatprep.subr.mxu0 0.0
    %v911 = vand.u32 %v83, 4294901760
    %v912 = vsub.f32 %v83, %v911
    %v913 = vand.u32 %v912, 4294901760
    %v914 = vsub.f32 %v912, %v913
    %v915 = vand.u32 %v914, 4294901760
    %916 = vmatpush1.msra.mxu0 %v915
    %917 = vmatprep.subr.mxu0 0.0
    %v918 = vand.u32 %v82, 4294901760
    %v919 = vsub.f32 %v82, %v918
    %v920 = vand.u32 %v919, 4294901760
    %v921 = vsub.f32 %v919, %v920
    %v922 = vand.u32 %v921, 4294901760
    %923 = vmatpush1.msra.mxu0 %v922
    %924 = vmatprep.subr.mxu0 0.0
    %v925 = vand.u32 %v81, 4294901760
    %v926 = vsub.f32 %v81, %v925
    %v927 = vand.u32 %v926, 4294901760
    %v928 = vsub.f32 %v926, %v927
    %v929 = vand.u32 %v928, 4294901760
    %930 = vmatpush1.msra.mxu0 %v929
    %931 = vmatprep.subr.mxu0 0.0
    %v932 = vand.u32 %v80, 4294901760
    %v933 = vsub.f32 %v80, %v932
    %v934 = vand.u32 %v933, 4294901760
    %v935 = vsub.f32 %v933, %v934
    %v936 = vand.u32 %v935, 4294901760
    %937 = vmatpush1.msra.mxu0 %v936
    %938 = vmatprep.subr.mxu0 0.0
    %v939 = vand.u32 %v79, 4294901760
    %v940 = vsub.f32 %v79, %v939
    %v941 = vand.u32 %v940, 4294901760
    %v942 = vsub.f32 %v940, %v941
    %v943 = vand.u32 %v942, 4294901760
    %944 = vmatpush1.msra.mxu0 %v943
    %945 = vmatprep.subr.mxu0 0.0
    %v946 = vand.u32 %v78, 4294901760
    %v947 = vsub.f32 %v78, %v946
    %v948 = vand.u32 %v947, 4294901760
    %v949 = vsub.f32 %v947, %v948
    %v950 = vand.u32 %v949, 4294901760
    %951 = vmatpush1.msra.mxu0 %v950
    %952 = vmatprep.subr.mxu0 0.0
    %v953 = vand.u32 %v77, 4294901760
    %v954 = vsub.f32 %v77, %v953
    %v955 = vand.u32 %v954, 4294901760
    %v956 = vsub.f32 %v954, %v955
    %v957 = vand.u32 %v956, 4294901760
    %958 = vmatpush1.msra.mxu0 %v957
    %959 = vmatprep.subr.mxu0 0.0
    %v960 = vand.u32 %v76, 4294901760
    %v961 = vsub.f32 %v76, %v960
    %v962 = vand.u32 %v961, 4294901760
    %v963 = vsub.f32 %v961, %v962
    %v964 = vand.u32 %v963, 4294901760
    %965 = vmatpush1.msra.mxu0 %v964
    %966 = vmatprep.subr.mxu0 0.0
    %v967 = vand.u32 %v75, 4294901760
    %v968 = vsub.f32 %v75, %v967
    %v969 = vand.u32 %v968, 4294901760
    %v970 = vsub.f32 %v968, %v969
    %v971 = vand.u32 %v970, 4294901760
    %972 = vmatpush1.msra.mxu0 %v971
    %973 = vmatprep.subr.mxu0 0.0
    %v974 = vand.u32 %v74, 4294901760
    %v975 = vsub.f32 %v74, %v974
    %v976 = vand.u32 %v975, 4294901760
    %v977 = vsub.f32 %v975, %v976
    %v978 = vand.u32 %v977, 4294901760
    %979 = vmatpush1.msra.mxu0 %v978
    %980 = vmatprep.subr.mxu0 0.0
    %v981 = vand.u32 %v73, 4294901760
    %v982 = vsub.f32 %v73, %v981
    %v983 = vand.u32 %v982, 4294901760
    %v984 = vsub.f32 %v982, %v983
    %v985 = vand.u32 %v984, 4294901760
    %986 = vmatpush1.msra.mxu0 %v985
    %987 = vmatprep.subr.mxu0 0.0
    %v988 = vand.u32 %v72, 4294901760
    %v989 = vsub.f32 %v72, %v988
    %v990 = vand.u32 %v989, 4294901760
    %v991 = vsub.f32 %v989, %v990
    %v992 = vand.u32 %v991, 4294901760
    %993 = vmatpush1.msra.mxu0 %v992
    %994 = vmatprep.subr.mxu0 0.0
    %v995 = vand.u32 %v71, 4294901760
    %v996 = vsub.f32 %v71, %v995
    %v997 = vand.u32 %v996, 4294901760
    %v998 = vsub.f32 %v996, %v997
    %v999 = vand.u32 %v998, 4294901760
    %1000 = vmatpush1.msra.mxu0 %v999
    %1001 = vmatprep.subr.mxu0 0.0
    %v1002 = vand.u32 %v102, 4294901760
    %v1003 = vsub.f32 %v102, %v1002
    %v1004 = vand.u32 %v1003, 4294901760
    %v1005 = vsub.f32 %v1003, %v1004
    %v1006 = vand.u32 %v1005, 4294901760
    %1007 = vmatpush2.msra.mxu0 %v1006
    %1008 = vmatprep.subr.mxu0 0.0
    %v1009 = vand.u32 %v101, 4294901760
    %v1010 = vsub.f32 %v101, %v1009
    %v1011 = vand.u32 %v1010, 4294901760
    %v1012 = vsub.f32 %v1010, %v1011
    %v1013 = vand.u32 %v1012, 4294901760
    %1014 = vmatpush2.msra.mxu0 %v1013
    %1015 = vmatprep.subr.mxu0 0.0
    %v1016 = vand.u32 %v100, 4294901760
    %v1017 = vsub.f32 %v100, %v1016
    %v1018 = vand.u32 %v1017, 4294901760
    %v1019 = vsub.f32 %v1017, %v1018
    %v1020 = vand.u32 %v1019, 4294901760
    %1021 = vmatpush2.msra.mxu0 %v1020
    %1022 = vmatprep.subr.mxu0 0.0
    %v1023 = vand.u32 %v99, 4294901760
    %v1024 = vsub.f32 %v99, %v1023
    %v1025 = vand.u32 %v1024, 4294901760
    %v1026 = vsub.f32 %v1024, %v1025
    %v1027 = vand.u32 %v1026, 4294901760
    %1028 = vmatpush2.msra.mxu0 %v1027
    %1029 = vmatprep.subr.mxu0 0.0
    %v1030 = vand.u32 %v98, 4294901760
    %v1031 = vsub.f32 %v98, %v1030
    %v1032 = vand.u32 %v1031, 4294901760
    %v1033 = vsub.f32 %v1031, %v1032
    %v1034 = vand.u32 %v1033, 4294901760
    %1035 = vmatpush2.msra.mxu0 %v1034
    %1036 = vmatprep.subr.mxu0 0.0
    %v1037 = vand.u32 %v97, 4294901760
    %v1038 = vsub.f32 %v97, %v1037
    %v1039 = vand.u32 %v1038, 4294901760
    %v1040 = vsub.f32 %v1038, %v1039
    %v1041 = vand.u32 %v1040, 4294901760
    %1042 = vmatpush2.msra.mxu0 %v1041
    %1043 = vmatprep.subr.mxu0 0.0
    %v1044 = vand.u32 %v96, 4294901760
    %v1045 = vsub.f32 %v96, %v1044
    %v1046 = vand.u32 %v1045, 4294901760
    %v1047 = vsub.f32 %v1045, %v1046
    %v1048 = vand.u32 %v1047, 4294901760
    %1049 = vmatpush2.msra.mxu0 %v1048
    %1050 = vmatprep.subr.mxu0 0.0
    %v1051 = vand.u32 %v95, 4294901760
    %v1052 = vsub.f32 %v95, %v1051
    %v1053 = vand.u32 %v1052, 4294901760
    %v1054 = vsub.f32 %v1052, %v1053
    %v1055 = vand.u32 %v1054, 4294901760
    %1056 = vmatpush2.msra.mxu0 %v1055
    %1057 = vmatprep.subr.mxu0 0.0
    %v1058 = vand.u32 %v94, 4294901760
    %v1059 = vsub.f32 %v94, %v1058
    %v1060 = vand.u32 %v1059, 4294901760
    %v1061 = vsub.f32 %v1059, %v1060
    %v1062 = vand.u32 %v1061, 4294901760
    %1063 = vmatpush2.msra.mxu0 %v1062
    %1064 = vmatprep.subr.mxu0 0.0
    %v1065 = vand.u32 %v93, 4294901760
    %v1066 = vsub.f32 %v93, %v1065
    %v1067 = vand.u32 %v1066, 4294901760
    %v1068 = vsub.f32 %v1066, %v1067
    %v1069 = vand.u32 %v1068, 4294901760
    %1070 = vmatpush2.msra.mxu0 %v1069
    %1071 = vmatprep.subr.mxu0 0.0
    %v1072 = vand.u32 %v92, 4294901760
    %v1073 = vsub.f32 %v92, %v1072
    %v1074 = vand.u32 %v1073, 4294901760
    %v1075 = vsub.f32 %v1073, %v1074
    %v1076 = vand.u32 %v1075, 4294901760
    %1077 = vmatpush2.msra.mxu0 %v1076
    %1078 = vmatprep.subr.mxu0 0.0
    %v1079 = vand.u32 %v91, 4294901760
    %v1080 = vsub.f32 %v91, %v1079
    %v1081 = vand.u32 %v1080, 4294901760
    %v1082 = vsub.f32 %v1080, %v1081
    %v1083 = vand.u32 %v1082, 4294901760
    %1084 = vmatpush2.msra.mxu0 %v1083
    %1085 = vmatprep.subr.mxu0 0.0
    %v1086 = vand.u32 %v90, 4294901760
    %v1087 = vsub.f32 %v90, %v1086
    %v1088 = vand.u32 %v1087, 4294901760
    %v1089 = vsub.f32 %v1087, %v1088
    %v1090 = vand.u32 %v1089, 4294901760
    %1091 = vmatpush2.msra.mxu0 %v1090
    %1092 = vmatprep.subr.mxu0 0.0
    %v1093 = vand.u32 %v89, 4294901760
    %v1094 = vsub.f32 %v89, %v1093
    %v1095 = vand.u32 %v1094, 4294901760
    %v1096 = vsub.f32 %v1094, %v1095
    %v1097 = vand.u32 %v1096, 4294901760
    %1098 = vmatpush2.msra.mxu0 %v1097
    %1099 = vmatprep.subr.mxu0 0.0
    %v1100 = vand.u32 %v88, 4294901760
    %v1101 = vsub.f32 %v88, %v1100
    %v1102 = vand.u32 %v1101, 4294901760
    %v1103 = vsub.f32 %v1101, %v1102
    %v1104 = vand.u32 %v1103, 4294901760
    %1105 = vmatpush2.msra.mxu0 %v1104
    %1106 = vmatprep.subr.mxu0 0.0
    %v1107 = vand.u32 %v87, 4294901760
    %v1108 = vsub.f32 %v87, %v1107
    %v1109 = vand.u32 %v1108, 4294901760
    %v1110 = vsub.f32 %v1108, %v1109
    %v1111 = vand.u32 %v1110, 4294901760
    %1112 = vmatpush2.msra.mxu0 %v1111
    %v1113 = vand.u32 %v69, 4294901760
    %1114 = vmatprep.mubr.f32.mxu0 %v1113
    %v1115 = vand.u32 %v68, 4294901760
    %1116 = vmatmul.mubr.f32.gmra.mxu0 %v1115
    %v1117 = vpop.f32.mrf.mxu0
    %v1118 = vadd.f32 %v886, %v1117
    %v1119 = vpop.f32.mrf.mxu0
    %1120 = vdwg.mxu0
    %1121 = vmatprep.subr.mxu0 0.0
    %v1122 = vand.u32 %v86, 4294901760
    %v1123 = vsub.f32 %v86, %v1122
    %1124 = vmatpush1.msra.mxu0 %v1123
    %1125 = vmatprep.subr.mxu0 0.0
    %v1126 = vand.u32 %v85, 4294901760
    %v1127 = vsub.f32 %v85, %v1126
    %1128 = vmatpush1.msra.mxu0 %v1127
    %1129 = vmatprep.subr.mxu0 0.0
    %v1130 = vand.u32 %v84, 4294901760
    %v1131 = vsub.f32 %v84, %v1130
    %1132 = vmatpush1.msra.mxu0 %v1131
    %1133 = vmatprep.subr.mxu0 0.0
    %v1134 = vand.u32 %v83, 4294901760
    %v1135 = vsub.f32 %v83, %v1134
    %1136 = vmatpush1.msra.mxu0 %v1135
    %1137 = vmatprep.subr.mxu0 0.0
    %v1138 = vand.u32 %v82, 4294901760
    %v1139 = vsub.f32 %v82, %v1138
    %1140 = vmatpush1.msra.mxu0 %v1139
    %1141 = vmatprep.subr.mxu0 0.0
    %v1142 = vand.u32 %v81, 4294901760
    %v1143 = vsub.f32 %v81, %v1142
    %1144 = vmatpush1.msra.mxu0 %v1143
    %1145 = vmatprep.subr.mxu0 0.0
    %v1146 = vand.u32 %v80, 4294901760
    %v1147 = vsub.f32 %v80, %v1146
    %1148 = vmatpush1.msra.mxu0 %v1147
    %1149 = vmatprep.subr.mxu0 0.0
    %v1150 = vand.u32 %v79, 4294901760
    %v1151 = vsub.f32 %v79, %v1150
    %1152 = vmatpush1.msra.mxu0 %v1151
    %1153 = vmatprep.subr.mxu0 0.0
    %v1154 = vand.u32 %v78, 4294901760
    %v1155 = vsub.f32 %v78, %v1154
    %1156 = vmatpush1.msra.mxu0 %v1155
    %1157 = vmatprep.subr.mxu0 0.0
    %v1158 = vand.u32 %v77, 4294901760
    %v1159 = vsub.f32 %v77, %v1158
    %1160 = vmatpush1.msra.mxu0 %v1159
    %1161 = vmatprep.subr.mxu0 0.0
    %v1162 = vand.u32 %v76, 4294901760
    %v1163 = vsub.f32 %v76, %v1162
    %1164 = vmatpush1.msra.mxu0 %v1163
    %1165 = vmatprep.subr.mxu0 0.0
    %v1166 = vand.u32 %v75, 4294901760
    %v1167 = vsub.f32 %v75, %v1166
    %1168 = vmatpush1.msra.mxu0 %v1167
    %1169 = vmatprep.subr.mxu0 0.0
    %v1170 = vand.u32 %v74, 4294901760
    %v1171 = vsub.f32 %v74, %v1170
    %1172 = vmatpush1.msra.mxu0 %v1171
    %1173 = vmatprep.subr.mxu0 0.0
    %v1174 = vand.u32 %v73, 4294901760
    %v1175 = vsub.f32 %v73, %v1174
    %1176 = vmatpush1.msra.mxu0 %v1175
    %1177 = vmatprep.subr.mxu0 0.0
    %v1178 = vand.u32 %v72, 4294901760
    %v1179 = vsub.f32 %v72, %v1178
    %1180 = vmatpush1.msra.mxu0 %v1179
    %1181 = vmatprep.subr.mxu0 0.0
    %v1182 = vand.u32 %v71, 4294901760
    %v1183 = vsub.f32 %v71, %v1182
    %1184 = vmatpush1.msra.mxu0 %v1183
    %1185 = vmatprep.subr.mxu0 0.0
    %v1186 = vand.u32 %v102, 4294901760
    %v1187 = vsub.f32 %v102, %v1186
    %1188 = vmatpush2.msra.mxu0 %v1187
    %1189 = vmatprep.subr.mxu0 0.0
    %v1190 = vand.u32 %v101, 4294901760
    %v1191 = vsub.f32 %v101, %v1190
    %1192 = vmatpush2.msra.mxu0 %v1191
    %1193 = vmatprep.subr.mxu0 0.0
    %v1194 = vand.u32 %v100, 4294901760
    %v1195 = vsub.f32 %v100, %v1194
    %1196 = vmatpush2.msra.mxu0 %v1195
    %1197 = vmatprep.subr.mxu0 0.0
    %v1198 = vand.u32 %v99, 4294901760
    %v1199 = vsub.f32 %v99, %v1198
    %1200 = vmatpush2.msra.mxu0 %v1199
    %1201 = vmatprep.subr.mxu0 0.0
    %v1202 = vand.u32 %v98, 4294901760
    %v1203 = vsub.f32 %v98, %v1202
    %1204 = vmatpush2.msra.mxu0 %v1203
    %1205 = vmatprep.subr.mxu0 0.0
    %v1206 = vand.u32 %v97, 4294901760
    %v1207 = vsub.f32 %v97, %v1206
    %1208 = vmatpush2.msra.mxu0 %v1207
    %1209 = vmatprep.subr.mxu0 0.0
    %v1210 = vand.u32 %v96, 4294901760
    %v1211 = vsub.f32 %v96, %v1210
    %1212 = vmatpush2.msra.mxu0 %v1211
    %1213 = vmatprep.subr.mxu0 0.0
    %v1214 = vand.u32 %v95, 4294901760
    %v1215 = vsub.f32 %v95, %v1214
    %1216 = vmatpush2.msra.mxu0 %v1215
    %1217 = vmatprep.subr.mxu0 0.0
    %v1218 = vand.u32 %v94, 4294901760
    %v1219 = vsub.f32 %v94, %v1218
    %1220 = vmatpush2.msra.mxu0 %v1219
    %1221 = vmatprep.subr.mxu0 0.0
    %v1222 = vand.u32 %v93, 4294901760
    %v1223 = vsub.f32 %v93, %v1222
    %1224 = vmatpush2.msra.mxu0 %v1223
    %1225 = vmatprep.subr.mxu0 0.0
    %v1226 = vand.u32 %v92, 4294901760
    %v1227 = vsub.f32 %v92, %v1226
    %1228 = vmatpush2.msra.mxu0 %v1227
    %1229 = vmatprep.subr.mxu0 0.0
    %v1230 = vand.u32 %v91, 4294901760
    %v1231 = vsub.f32 %v91, %v1230
    %1232 = vmatpush2.msra.mxu0 %v1231
    %1233 = vmatprep.subr.mxu0 0.0
    %v1234 = vand.u32 %v90, 4294901760
    %v1235 = vsub.f32 %v90, %v1234
    %1236 = vmatpush2.msra.mxu0 %v1235
    %1237 = vmatprep.subr.mxu0 0.0
    %v1238 = vand.u32 %v89, 4294901760
    %v1239 = vsub.f32 %v89, %v1238
    %1240 = vmatpush2.msra.mxu0 %v1239
    %1241 = vmatprep.subr.mxu0 0.0
    %v1242 = vand.u32 %v88, 4294901760
    %v1243 = vsub.f32 %v88, %v1242
    %1244 = vmatpush2.msra.mxu0 %v1243
    %1245 = vmatprep.subr.mxu0 0.0
    %v1246 = vand.u32 %v87, 4294901760
    %v1247 = vsub.f32 %v87, %v1246
    %1248 = vmatpush2.msra.mxu0 %v1247
    %v1249 = vand.u32 %v69, 4294901760
    %v1250 = vsub.f32 %v69, %v1249
    %1251 = vmatprep.mubr.f32.mxu0 %v1250
    %v1252 = vand.u32 %v68, 4294901760
    %v1253 = vsub.f32 %v68, %v1252
    %1254 = vmatmul.mubr.f32.gmra.mxu0 %v1253
    %v1255 = vpop.f32.mrf.mxu0
    %v1256 = vadd.f32 %v1118, %v1255
    %v1257 = vpop.f32.mrf.mxu0
    %1258 = vdwg.mxu0
    %1259 = vmatprep.subr.mxu0 0.0
    %v1260 = vand.u32 %v86, 4294901760
    %1261 = vmatpush1.msra.mxu0 %v1260
    %1262 = vmatprep.subr.mxu0 0.0
    %v1263 = vand.u32 %v85, 4294901760
    %1264 = vmatpush1.msra.mxu0 %v1263
    %1265 = vmatprep.subr.mxu0 0.0
    %v1266 = vand.u32 %v84, 4294901760
    %1267 = vmatpush1.msra.mxu0 %v1266
    %1268 = vmatprep.subr.mxu0 0.0
    %v1269 = vand.u32 %v83, 4294901760
    %1270 = vmatpush1.msra.mxu0 %v1269
    %1271 = vmatprep.subr.mxu0 0.0
    %v1272 = vand.u32 %v82, 4294901760
    %1273 = vmatpush1.msra.mxu0 %v1272
    %1274 = vmatprep.subr.mxu0 0.0
    %v1275 = vand.u32 %v81, 4294901760
    %1276 = vmatpush1.msra.mxu0 %v1275
    %1277 = vmatprep.subr.mxu0 0.0
    %v1278 = vand.u32 %v80, 4294901760
    %1279 = vmatpush1.msra.mxu0 %v1278
    %1280 = vmatprep.subr.mxu0 0.0
    %v1281 = vand.u32 %v79, 4294901760
    %1282 = vmatpush1.msra.mxu0 %v1281
    %1283 = vmatprep.subr.mxu0 0.0
    %v1284 = vand.u32 %v78, 4294901760
    %1285 = vmatpush1.msra.mxu0 %v1284
    %1286 = vmatprep.subr.mxu0 0.0
    %v1287 = vand.u32 %v77, 4294901760
    %1288 = vmatpush1.msra.mxu0 %v1287
    %1289 = vmatprep.subr.mxu0 0.0
    %v1290 = vand.u32 %v76, 4294901760
    %1291 = vmatpush1.msra.mxu0 %v1290
    %1292 = vmatprep.subr.mxu0 0.0
    %v1293 = vand.u32 %v75, 4294901760
    %1294 = vmatpush1.msra.mxu0 %v1293
    %1295 = vmatprep.subr.mxu0 0.0
    %v1296 = vand.u32 %v74, 4294901760
    %1297 = vmatpush1.msra.mxu0 %v1296
    %1298 = vmatprep.subr.mxu0 0.0
    %v1299 = vand.u32 %v73, 4294901760
    %1300 = vmatpush1.msra.mxu0 %v1299
    %1301 = vmatprep.subr.mxu0 0.0
    %v1302 = vand.u32 %v72, 4294901760
    %1303 = vmatpush1.msra.mxu0 %v1302
    %1304 = vmatprep.subr.mxu0 0.0
    %v1305 = vand.u32 %v71, 4294901760
    %1306 = vmatpush1.msra.mxu0 %v1305
    %1307 = vmatprep.subr.mxu0 0.0
    %v1308 = vand.u32 %v102, 4294901760
    %1309 = vmatpush2.msra.mxu0 %v1308
    %1310 = vmatprep.subr.mxu0 0.0
    %v1311 = vand.u32 %v101, 4294901760
    %1312 = vmatpush2.msra.mxu0 %v1311
    %1313 = vmatprep.subr.mxu0 0.0
    %v1314 = vand.u32 %v100, 4294901760
    %1315 = vmatpush2.msra.mxu0 %v1314
    %1316 = vmatprep.subr.mxu0 0.0
    %v1317 = vand.u32 %v99, 4294901760
    %1318 = vmatpush2.msra.mxu0 %v1317
    %1319 = vmatprep.subr.mxu0 0.0
    %v1320 = vand.u32 %v98, 4294901760
    %1321 = vmatpush2.msra.mxu0 %v1320
    %1322 = vmatprep.subr.mxu0 0.0
    %v1323 = vand.u32 %v97, 4294901760
    %1324 = vmatpush2.msra.mxu0 %v1323
    %1325 = vmatprep.subr.mxu0 0.0
    %v1326 = vand.u32 %v96, 4294901760
    %1327 = vmatpush2.msra.mxu0 %v1326
    %1328 = vmatprep.subr.mxu0 0.0
    %v1329 = vand.u32 %v95, 4294901760
    %1330 = vmatpush2.msra.mxu0 %v1329
    %1331 = vmatprep.subr.mxu0 0.0
    %v1332 = vand.u32 %v94, 4294901760
    %1333 = vmatpush2.msra.mxu0 %v1332
    %1334 = vmatprep.subr.mxu0 0.0
    %v1335 = vand.u32 %v93, 4294901760
    %1336 = vmatpush2.msra.mxu0 %v1335
    %1337 = vmatprep.subr.mxu0 0.0
    %v1338 = vand.u32 %v92, 4294901760
    %1339 = vmatpush2.msra.mxu0 %v1338
    %1340 = vmatprep.subr.mxu0 0.0
    %v1341 = vand.u32 %v91, 4294901760
    %1342 = vmatpush2.msra.mxu0 %v1341
    %1343 = vmatprep.subr.mxu0 0.0
    %v1344 = vand.u32 %v90, 4294901760
    %1345 = vmatpush2.msra.mxu0 %v1344
    %1346 = vmatprep.subr.mxu0 0.0
    %v1347 = vand.u32 %v89, 4294901760
    %1348 = vmatpush2.msra.mxu0 %v1347
    %1349 = vmatprep.subr.mxu0 0.0
    %v1350 = vand.u32 %v88, 4294901760
    %1351 = vmatpush2.msra.mxu0 %v1350
    %1352 = vmatprep.subr.mxu0 0.0
    %v1353 = vand.u32 %v87, 4294901760
    %1354 = vmatpush2.msra.mxu0 %v1353
    %v1355 = vand.u32 %v69, 4294901760
    %v1356 = vsub.f32 %v69, %v1355
    %v1357 = vand.u32 %v1356, 4294901760
    %1358 = vmatprep.mubr.f32.mxu0 %v1357
    %v1359 = vand.u32 %v68, 4294901760
    %v1360 = vsub.f32 %v68, %v1359
    %v1361 = vand.u32 %v1360, 4294901760
    %1362 = vmatmul.mubr.f32.gmra.mxu0 %v1361
    %v1363 = vpop.f32.mrf.mxu0
    %v1364 = vadd.f32 %v1256, %v1363
    %v1365 = vpop.f32.mrf.mxu0
    %1366 = vdwg.mxu0
    %1367 = vmatprep.subr.mxu0 0.0
    %v1368 = vand.u32 %v86, 4294901760
    %v1369 = vsub.f32 %v86, %v1368
    %v1370 = vand.u32 %v1369, 4294901760
    %1371 = vmatpush1.msra.mxu0 %v1370
    %1372 = vmatprep.subr.mxu0 0.0
    %v1373 = vand.u32 %v85, 4294901760
    %v1374 = vsub.f32 %v85, %v1373
    %v1375 = vand.u32 %v1374, 4294901760
    %1376 = vmatpush1.msra.mxu0 %v1375
    %1377 = vmatprep.subr.mxu0 0.0
    %v1378 = vand.u32 %v84, 4294901760
    %v1379 = vsub.f32 %v84, %v1378
    %v1380 = vand.u32 %v1379, 4294901760
    %1381 = vmatpush1.msra.mxu0 %v1380
    %1382 = vmatprep.subr.mxu0 0.0
    %v1383 = vand.u32 %v83, 4294901760
    %v1384 = vsub.f32 %v83, %v1383
    %v1385 = vand.u32 %v1384, 4294901760
    %1386 = vmatpush1.msra.mxu0 %v1385
    %1387 = vmatprep.subr.mxu0 0.0
    %v1388 = vand.u32 %v82, 4294901760
    %v1389 = vsub.f32 %v82, %v1388
    %v1390 = vand.u32 %v1389, 4294901760
    %1391 = vmatpush1.msra.mxu0 %v1390
    %1392 = vmatprep.subr.mxu0 0.0
    %v1393 = vand.u32 %v81, 4294901760
    %v1394 = vsub.f32 %v81, %v1393
    %v1395 = vand.u32 %v1394, 4294901760
    %1396 = vmatpush1.msra.mxu0 %v1395
    %1397 = vmatprep.subr.mxu0 0.0
    %v1398 = vand.u32 %v80, 4294901760
    %v1399 = vsub.f32 %v80, %v1398
    %v1400 = vand.u32 %v1399, 4294901760
    %1401 = vmatpush1.msra.mxu0 %v1400
    %1402 = vmatprep.subr.mxu0 0.0
    %v1403 = vand.u32 %v79, 4294901760
    %v1404 = vsub.f32 %v79, %v1403
    %v1405 = vand.u32 %v1404, 4294901760
    %1406 = vmatpush1.msra.mxu0 %v1405
    %1407 = vmatprep.subr.mxu0 0.0
    %v1408 = vand.u32 %v78, 4294901760
    %v1409 = vsub.f32 %v78, %v1408
    %v1410 = vand.u32 %v1409, 4294901760
    %1411 = vmatpush1.msra.mxu0 %v1410
    %1412 = vmatprep.subr.mxu0 0.0
    %v1413 = vand.u32 %v77, 4294901760
    %v1414 = vsub.f32 %v77, %v1413
    %v1415 = vand.u32 %v1414, 4294901760
    %1416 = vmatpush1.msra.mxu0 %v1415
    %1417 = vmatprep.subr.mxu0 0.0
    %v1418 = vand.u32 %v76, 4294901760
    %v1419 = vsub.f32 %v76, %v1418
    %v1420 = vand.u32 %v1419, 4294901760
    %1421 = vmatpush1.msra.mxu0 %v1420
    %1422 = vmatprep.subr.mxu0 0.0
    %v1423 = vand.u32 %v75, 4294901760
    %v1424 = vsub.f32 %v75, %v1423
    %v1425 = vand.u32 %v1424, 4294901760
    %1426 = vmatpush1.msra.mxu0 %v1425
    %1427 = vmatprep.subr.mxu0 0.0
    %v1428 = vand.u32 %v74, 4294901760
    %v1429 = vsub.f32 %v74, %v1428
    %v1430 = vand.u32 %v1429, 4294901760
    %1431 = vmatpush1.msra.mxu0 %v1430
    %1432 = vmatprep.subr.mxu0 0.0
    %v1433 = vand.u32 %v73, 4294901760
    %v1434 = vsub.f32 %v73, %v1433
    %v1435 = vand.u32 %v1434, 4294901760
    %1436 = vmatpush1.msra.mxu0 %v1435
    %1437 = vmatprep.subr.mxu0 0.0
    %v1438 = vand.u32 %v72, 4294901760
    %v1439 = vsub.f32 %v72, %v1438
    %v1440 = vand.u32 %v1439, 4294901760
    %1441 = vmatpush1.msra.mxu0 %v1440
    %1442 = vmatprep.subr.mxu0 0.0
    %v1443 = vand.u32 %v71, 4294901760
    %v1444 = vsub.f32 %v71, %v1443
    %v1445 = vand.u32 %v1444, 4294901760
    %1446 = vmatpush1.msra.mxu0 %v1445
    %1447 = vmatprep.subr.mxu0 0.0
    %v1448 = vand.u32 %v102, 4294901760
    %v1449 = vsub.f32 %v102, %v1448
    %v1450 = vand.u32 %v1449, 4294901760
    %1451 = vmatpush2.msra.mxu0 %v1450
    %1452 = vmatprep.subr.mxu0 0.0
    %v1453 = vand.u32 %v101, 4294901760
    %v1454 = vsub.f32 %v101, %v1453
    %v1455 = vand.u32 %v1454, 4294901760
    %1456 = vmatpush2.msra.mxu0 %v1455
    %1457 = vmatprep.subr.mxu0 0.0
    %v1458 = vand.u32 %v100, 4294901760
    %v1459 = vsub.f32 %v100, %v1458
    %v1460 = vand.u32 %v1459, 4294901760
    %1461 = vmatpush2.msra.mxu0 %v1460
    %1462 = vmatprep.subr.mxu0 0.0
    %v1463 = vand.u32 %v99, 4294901760
    %v1464 = vsub.f32 %v99, %v1463
    %v1465 = vand.u32 %v1464, 4294901760
    %1466 = vmatpush2.msra.mxu0 %v1465
    %1467 = vmatprep.subr.mxu0 0.0
    %v1468 = vand.u32 %v98, 4294901760
    %v1469 = vsub.f32 %v98, %v1468
    %v1470 = vand.u32 %v1469, 4294901760
    %1471 = vmatpush2.msra.mxu0 %v1470
    %1472 = vmatprep.subr.mxu0 0.0
    %v1473 = vand.u32 %v97, 4294901760
    %v1474 = vsub.f32 %v97, %v1473
    %v1475 = vand.u32 %v1474, 4294901760
    %1476 = vmatpush2.msra.mxu0 %v1475
    %1477 = vmatprep.subr.mxu0 0.0
    %v1478 = vand.u32 %v96, 4294901760
    %v1479 = vsub.f32 %v96, %v1478
    %v1480 = vand.u32 %v1479, 4294901760
    %1481 = vmatpush2.msra.mxu0 %v1480
    %1482 = vmatprep.subr.mxu0 0.0
    %v1483 = vand.u32 %v95, 4294901760
    %v1484 = vsub.f32 %v95, %v1483
    %v1485 = vand.u32 %v1484, 4294901760
    %1486 = vmatpush2.msra.mxu0 %v1485
    %1487 = vmatprep.subr.mxu0 0.0
    %v1488 = vand.u32 %v94, 4294901760
    %v1489 = vsub.f32 %v94, %v1488
    %v1490 = vand.u32 %v1489, 4294901760
    %1491 = vmatpush2.msra.mxu0 %v1490
    %1492 = vmatprep.subr.mxu0 0.0
    %v1493 = vand.u32 %v93, 4294901760
    %v1494 = vsub.f32 %v93, %v1493
    %v1495 = vand.u32 %v1494, 4294901760
    %1496 = vmatpush2.msra.mxu0 %v1495
    %1497 = vmatprep.subr.mxu0 0.0
    %v1498 = vand.u32 %v92, 4294901760
    %v1499 = vsub.f32 %v92, %v1498
    %v1500 = vand.u32 %v1499, 4294901760
    %1501 = vmatpush2.msra.mxu0 %v1500
    %1502 = vmatprep.subr.mxu0 0.0
    %v1503 = vand.u32 %v91, 4294901760
    %v1504 = vsub.f32 %v91, %v1503
    %v1505 = vand.u32 %v1504, 4294901760
    %1506 = vmatpush2.msra.mxu0 %v1505
    %1507 = vmatprep.subr.mxu0 0.0
    %v1508 = vand.u32 %v90, 4294901760
    %v1509 = vsub.f32 %v90, %v1508
    %v1510 = vand.u32 %v1509, 4294901760
    %1511 = vmatpush2.msra.mxu0 %v1510
    %1512 = vmatprep.subr.mxu0 0.0
    %v1513 = vand.u32 %v89, 4294901760
    %v1514 = vsub.f32 %v89, %v1513
    %v1515 = vand.u32 %v1514, 4294901760
    %1516 = vmatpush2.msra.mxu0 %v1515
    %1517 = vmatprep.subr.mxu0 0.0
    %v1518 = vand.u32 %v88, 4294901760
    %v1519 = vsub.f32 %v88, %v1518
    %v1520 = vand.u32 %v1519, 4294901760
    %1521 = vmatpush2.msra.mxu0 %v1520
    %1522 = vmatprep.subr.mxu0 0.0
    %v1523 = vand.u32 %v87, 4294901760
    %v1524 = vsub.f32 %v87, %v1523
    %v1525 = vand.u32 %v1524, 4294901760
    %1526 = vmatpush2.msra.mxu0 %v1525
    %v1527 = vand.u32 %v69, 4294901760
    %1528 = vmatprep.mubr.f32.mxu0 %v1527
    %v1529 = vand.u32 %v68, 4294901760
    %1530 = vmatmul.mubr.f32.gmra.mxu0 %v1529
    %v1531 = vpop.f32.mrf.mxu0
    %v1532 = vadd.f32 %v1364, %v1531
    %v1533 = vpop.f32.mrf.mxu0
    %1534 = vdwg.mxu0
    %1535 = vmatprep.subr.mxu0 0.0
    %v1536 = vand.u32 %v86, 4294901760
    %1537 = vmatpush1.msra.mxu0 %v1536
    %1538 = vmatprep.subr.mxu0 0.0
    %v1539 = vand.u32 %v85, 4294901760
    %1540 = vmatpush1.msra.mxu0 %v1539
    %1541 = vmatprep.subr.mxu0 0.0
    %v1542 = vand.u32 %v84, 4294901760
    %1543 = vmatpush1.msra.mxu0 %v1542
    %1544 = vmatprep.subr.mxu0 0.0
    %v1545 = vand.u32 %v83, 4294901760
    %1546 = vmatpush1.msra.mxu0 %v1545
    %1547 = vmatprep.subr.mxu0 0.0
    %v1548 = vand.u32 %v82, 4294901760
    %1549 = vmatpush1.msra.mxu0 %v1548
    %1550 = vmatprep.subr.mxu0 0.0
    %v1551 = vand.u32 %v81, 4294901760
    %1552 = vmatpush1.msra.mxu0 %v1551
    %1553 = vmatprep.subr.mxu0 0.0
    %v1554 = vand.u32 %v80, 4294901760
    %1555 = vmatpush1.msra.mxu0 %v1554
    %1556 = vmatprep.subr.mxu0 0.0
    %v1557 = vand.u32 %v79, 4294901760
    %1558 = vmatpush1.msra.mxu0 %v1557
    %1559 = vmatprep.subr.mxu0 0.0
    %v1560 = vand.u32 %v78, 4294901760
    %1561 = vmatpush1.msra.mxu0 %v1560
    %1562 = vmatprep.subr.mxu0 0.0
    %v1563 = vand.u32 %v77, 4294901760
    %1564 = vmatpush1.msra.mxu0 %v1563
    %1565 = vmatprep.subr.mxu0 0.0
    %v1566 = vand.u32 %v76, 4294901760
    %1567 = vmatpush1.msra.mxu0 %v1566
    %1568 = vmatprep.subr.mxu0 0.0
    %v1569 = vand.u32 %v75, 4294901760
    %1570 = vmatpush1.msra.mxu0 %v1569
    %1571 = vmatprep.subr.mxu0 0.0
    %v1572 = vand.u32 %v74, 4294901760
    %1573 = vmatpush1.msra.mxu0 %v1572
    %1574 = vmatprep.subr.mxu0 0.0
    %v1575 = vand.u32 %v73, 4294901760
    %1576 = vmatpush1.msra.mxu0 %v1575
    %1577 = vmatprep.subr.mxu0 0.0
    %v1578 = vand.u32 %v72, 4294901760
    %1579 = vmatpush1.msra.mxu0 %v1578
    %1580 = vmatprep.subr.mxu0 0.0
    %v1581 = vand.u32 %v71, 4294901760
    %1582 = vmatpush1.msra.mxu0 %v1581
    %1583 = vmatprep.subr.mxu0 0.0
    %v1584 = vand.u32 %v102, 4294901760
    %1585 = vmatpush2.msra.mxu0 %v1584
    %1586 = vmatprep.subr.mxu0 0.0
    %v1587 = vand.u32 %v101, 4294901760
    %1588 = vmatpush2.msra.mxu0 %v1587
    %1589 = vmatprep.subr.mxu0 0.0
    %v1590 = vand.u32 %v100, 4294901760
    %1591 = vmatpush2.msra.mxu0 %v1590
    %1592 = vmatprep.subr.mxu0 0.0
    %v1593 = vand.u32 %v99, 4294901760
    %1594 = vmatpush2.msra.mxu0 %v1593
    %1595 = vmatprep.subr.mxu0 0.0
    %v1596 = vand.u32 %v98, 4294901760
    %1597 = vmatpush2.msra.mxu0 %v1596
    %1598 = vmatprep.subr.mxu0 0.0
    %v1599 = vand.u32 %v97, 4294901760
    %1600 = vmatpush2.msra.mxu0 %v1599
    %1601 = vmatprep.subr.mxu0 0.0
    %v1602 = vand.u32 %v96, 4294901760
    %1603 = vmatpush2.msra.mxu0 %v1602
    %1604 = vmatprep.subr.mxu0 0.0
    %v1605 = vand.u32 %v95, 4294901760
    %1606 = vmatpush2.msra.mxu0 %v1605
    %1607 = vmatprep.subr.mxu0 0.0
    %v1608 = vand.u32 %v94, 4294901760
    %1609 = vmatpush2.msra.mxu0 %v1608
    %1610 = vmatprep.subr.mxu0 0.0
    %v1611 = vand.u32 %v93, 4294901760
    %1612 = vmatpush2.msra.mxu0 %v1611
    %1613 = vmatprep.subr.mxu0 0.0
    %v1614 = vand.u32 %v92, 4294901760
    %1615 = vmatpush2.msra.mxu0 %v1614
    %1616 = vmatprep.subr.mxu0 0.0
    %v1617 = vand.u32 %v91, 4294901760
    %1618 = vmatpush2.msra.mxu0 %v1617
    %1619 = vmatprep.subr.mxu0 0.0
    %v1620 = vand.u32 %v90, 4294901760
    %1621 = vmatpush2.msra.mxu0 %v1620
    %1622 = vmatprep.subr.mxu0 0.0
    %v1623 = vand.u32 %v89, 4294901760
    %1624 = vmatpush2.msra.mxu0 %v1623
    %1625 = vmatprep.subr.mxu0 0.0
    %v1626 = vand.u32 %v88, 4294901760
    %1627 = vmatpush2.msra.mxu0 %v1626
    %1628 = vmatprep.subr.mxu0 0.0
    %v1629 = vand.u32 %v87, 4294901760
    %1630 = vmatpush2.msra.mxu0 %v1629
    %v1631 = vand.u32 %v69, 4294901760
    %1632 = vmatprep.mubr.f32.mxu0 %v1631
    %v1633 = vand.u32 %v68, 4294901760
    %1634 = vmatmul.mubr.f32.gmra.mxu0 %v1633
    %v1635 = vpop.f32.mrf.mxu0
    %v1636 = vadd.f32 %v1532, %v1635
    %v1637 = vpop.f32.mrf.mxu0
    %1638 = vdwg.mxu0
    %1639 = vmatprep.subr.mxu0 0.0
    %v1640 = vand.u32 %v118, 4294901760
    %1641 = vmatpush1.msra.mxu0 %v1640
    %1642 = vmatprep.subr.mxu0 0.0
    %v1643 = vand.u32 %v117, 4294901760
    %1644 = vmatpush1.msra.mxu0 %v1643
    %1645 = vmatprep.subr.mxu0 0.0
    %v1646 = vand.u32 %v116, 4294901760
    %1647 = vmatpush1.msra.mxu0 %v1646
    %1648 = vmatprep.subr.mxu0 0.0
    %v1649 = vand.u32 %v115, 4294901760
    %1650 = vmatpush1.msra.mxu0 %v1649
    %1651 = vmatprep.subr.mxu0 0.0
    %v1652 = vand.u32 %v114, 4294901760
    %1653 = vmatpush1.msra.mxu0 %v1652
    %1654 = vmatprep.subr.mxu0 0.0
    %v1655 = vand.u32 %v113, 4294901760
    %1656 = vmatpush1.msra.mxu0 %v1655
    %1657 = vmatprep.subr.mxu0 0.0
    %v1658 = vand.u32 %v112, 4294901760
    %1659 = vmatpush1.msra.mxu0 %v1658
    %1660 = vmatprep.subr.mxu0 0.0
    %v1661 = vand.u32 %v111, 4294901760
    %1662 = vmatpush1.msra.mxu0 %v1661
    %1663 = vmatprep.subr.mxu0 0.0
    %v1664 = vand.u32 %v110, 4294901760
    %1665 = vmatpush1.msra.mxu0 %v1664
    %1666 = vmatprep.subr.mxu0 0.0
    %v1667 = vand.u32 %v109, 4294901760
    %1668 = vmatpush1.msra.mxu0 %v1667
    %1669 = vmatprep.subr.mxu0 0.0
    %v1670 = vand.u32 %v108, 4294901760
    %1671 = vmatpush1.msra.mxu0 %v1670
    %1672 = vmatprep.subr.mxu0 0.0
    %v1673 = vand.u32 %v107, 4294901760
    %1674 = vmatpush1.msra.mxu0 %v1673
    %1675 = vmatprep.subr.mxu0 0.0
    %v1676 = vand.u32 %v106, 4294901760
    %1677 = vmatpush1.msra.mxu0 %v1676
    %1678 = vmatprep.subr.mxu0 0.0
    %v1679 = vand.u32 %v105, 4294901760
    %1680 = vmatpush1.msra.mxu0 %v1679
    %1681 = vmatprep.subr.mxu0 0.0
    %v1682 = vand.u32 %v104, 4294901760
    %1683 = vmatpush1.msra.mxu0 %v1682
    %1684 = vmatprep.subr.mxu0 0.0
    %v1685 = vand.u32 %v103, 4294901760
    %1686 = vmatpush1.msra.mxu0 %v1685
    %1687 = vmatprep.subr.mxu0 0.0
    %1688 = vmatpush2.msra.mxu0 0.0
    %1689 = vmatprep.subr.mxu0 0.0
    %1690 = vmatpush2.msra.mxu0 0.0
    %1691 = vmatprep.subr.mxu0 0.0
    %1692 = vmatpush2.msra.mxu0 0.0
    %1693 = vmatprep.subr.mxu0 0.0
    %1694 = vmatpush2.msra.mxu0 0.0
    %1695 = vmatprep.subr.mxu0 0.0
    %1696 = vmatpush2.msra.mxu0 0.0
    %1697 = vmatprep.subr.mxu0 0.0
    %1698 = vmatpush2.msra.mxu0 0.0
    %1699 = vmatprep.subr.mxu0 0.0
    %1700 = vmatpush2.msra.mxu0 0.0
    %1701 = vmatprep.subr.mxu0 0.0
    %1702 = vmatpush2.msra.mxu0 0.0
    %1703 = vmatprep.subr.mxu0 0.0
    %1704 = vmatpush2.msra.mxu0 0.0
    %1705 = vmatprep.subr.mxu0 0.0
    %1706 = vmatpush2.msra.mxu0 0.0
    %1707 = vmatprep.subr.mxu0 0.0
    %1708 = vmatpush2.msra.mxu0 0.0
    %1709 = vmatprep.subr.mxu0 0.0
    %1710 = vmatpush2.msra.mxu0 0.0
    %1711 = vmatprep.subr.mxu0 0.0
    %1712 = vmatpush2.msra.mxu0 0.0
    %1713 = vmatprep.subr.mxu0 0.0
    %1714 = vmatpush2.msra.mxu0 0.0
    %1715 = vmatprep.subr.mxu0 0.0
    %1716 = vmatpush2.msra.mxu0 0.0
    %1717 = vmatprep.subr.mxu0 0.0
    %1718 = vmatpush2.msra.mxu0 0.0
    %1719 = vmatprep.mubr.f32.mxu0 0.0
    %v1720 = vand.u32 %v70, 4294901760
    %v1721 = vsub.f32 %v70, %v1720
    %v1722 = vand.u32 %v1721, 4294901760
    %v1723 = vsub.f32 %v1721, %v1722
    %v1724 = vand.u32 %v1723, 4294901760
    %1725 = vmatmul.mubr.f32.gmra.mxu0 %v1724
    %v1726 = vpop.f32.mrf.mxu0
    %v1727 = vadd.f32 %v1636, %v1726
    %v1728 = vpop.f32.mrf.mxu0
    %1729 = vdwg.mxu0
    %1730 = vmatprep.subr.mxu0 0.0
    %v1731 = vand.u32 %v118, 4294901760
    %v1732 = vsub.f32 %v118, %v1731
    %v1733 = vand.u32 %v1732, 4294901760
    %v1734 = vsub.f32 %v1732, %v1733
    %v1735 = vand.u32 %v1734, 4294901760
    %1736 = vmatpush1.msra.mxu0 %v1735
    %1737 = vmatprep.subr.mxu0 0.0
    %v1738 = vand.u32 %v117, 4294901760
    %v1739 = vsub.f32 %v117, %v1738
    %v1740 = vand.u32 %v1739, 4294901760
    %v1741 = vsub.f32 %v1739, %v1740
    %v1742 = vand.u32 %v1741, 4294901760
    %1743 = vmatpush1.msra.mxu0 %v1742
    %1744 = vmatprep.subr.mxu0 0.0
    %v1745 = vand.u32 %v116, 4294901760
    %v1746 = vsub.f32 %v116, %v1745
    %v1747 = vand.u32 %v1746, 4294901760
    %v1748 = vsub.f32 %v1746, %v1747
    %v1749 = vand.u32 %v1748, 4294901760
    %1750 = vmatpush1.msra.mxu0 %v1749
    %1751 = vmatprep.subr.mxu0 0.0
    %v1752 = vand.u32 %v115, 4294901760
    %v1753 = vsub.f32 %v115, %v1752
    %v1754 = vand.u32 %v1753, 4294901760
    %v1755 = vsub.f32 %v1753, %v1754
    %v1756 = vand.u32 %v1755, 4294901760
    %1757 = vmatpush1.msra.mxu0 %v1756
    %1758 = vmatprep.subr.mxu0 0.0
    %v1759 = vand.u32 %v114, 4294901760
    %v1760 = vsub.f32 %v114, %v1759
    %v1761 = vand.u32 %v1760, 4294901760
    %v1762 = vsub.f32 %v1760, %v1761
    %v1763 = vand.u32 %v1762, 4294901760
    %1764 = vmatpush1.msra.mxu0 %v1763
    %1765 = vmatprep.subr.mxu0 0.0
    %v1766 = vand.u32 %v113, 4294901760
    %v1767 = vsub.f32 %v113, %v1766
    %v1768 = vand.u32 %v1767, 4294901760
    %v1769 = vsub.f32 %v1767, %v1768
    %v1770 = vand.u32 %v1769, 4294901760
    %1771 = vmatpush1.msra.mxu0 %v1770
    %1772 = vmatprep.subr.mxu0 0.0
    %v1773 = vand.u32 %v112, 4294901760
    %v1774 = vsub.f32 %v112, %v1773
    %v1775 = vand.u32 %v1774, 4294901760
    %v1776 = vsub.f32 %v1774, %v1775
    %v1777 = vand.u32 %v1776, 4294901760
    %1778 = vmatpush1.msra.mxu0 %v1777
    %1779 = vmatprep.subr.mxu0 0.0
    %v1780 = vand.u32 %v111, 4294901760
    %v1781 = vsub.f32 %v111, %v1780
    %v1782 = vand.u32 %v1781, 4294901760
    %v1783 = vsub.f32 %v1781, %v1782
    %v1784 = vand.u32 %v1783, 4294901760
    %1785 = vmatpush1.msra.mxu0 %v1784
    %1786 = vmatprep.subr.mxu0 0.0
    %v1787 = vand.u32 %v110, 4294901760
    %v1788 = vsub.f32 %v110, %v1787
    %v1789 = vand.u32 %v1788, 4294901760
    %v1790 = vsub.f32 %v1788, %v1789
    %v1791 = vand.u32 %v1790, 4294901760
    %1792 = vmatpush1.msra.mxu0 %v1791
    %1793 = vmatprep.subr.mxu0 0.0
    %v1794 = vand.u32 %v109, 4294901760
    %v1795 = vsub.f32 %v109, %v1794
    %v1796 = vand.u32 %v1795, 4294901760
    %v1797 = vsub.f32 %v1795, %v1796
    %v1798 = vand.u32 %v1797, 4294901760
    %1799 = vmatpush1.msra.mxu0 %v1798
    %1800 = vmatprep.subr.mxu0 0.0
    %v1801 = vand.u32 %v108, 4294901760
    %v1802 = vsub.f32 %v108, %v1801
    %v1803 = vand.u32 %v1802, 4294901760
    %v1804 = vsub.f32 %v1802, %v1803
    %v1805 = vand.u32 %v1804, 4294901760
    %1806 = vmatpush1.msra.mxu0 %v1805
    %1807 = vmatprep.subr.mxu0 0.0
    %v1808 = vand.u32 %v107, 4294901760
    %v1809 = vsub.f32 %v107, %v1808
    %v1810 = vand.u32 %v1809, 4294901760
    %v1811 = vsub.f32 %v1809, %v1810
    %v1812 = vand.u32 %v1811, 4294901760
    %1813 = vmatpush1.msra.mxu0 %v1812
    %1814 = vmatprep.subr.mxu0 0.0
    %v1815 = vand.u32 %v106, 4294901760
    %v1816 = vsub.f32 %v106, %v1815
    %v1817 = vand.u32 %v1816, 4294901760
    %v1818 = vsub.f32 %v1816, %v1817
    %v1819 = vand.u32 %v1818, 4294901760
    %1820 = vmatpush1.msra.mxu0 %v1819
    %1821 = vmatprep.subr.mxu0 0.0
    %v1822 = vand.u32 %v105, 4294901760
    %v1823 = vsub.f32 %v105, %v1822
    %v1824 = vand.u32 %v1823, 4294901760
    %v1825 = vsub.f32 %v1823, %v1824
    %v1826 = vand.u32 %v1825, 4294901760
    %1827 = vmatpush1.msra.mxu0 %v1826
    %1828 = vmatprep.subr.mxu0 0.0
    %v1829 = vand.u32 %v104, 4294901760
    %v1830 = vsub.f32 %v104, %v1829
    %v1831 = vand.u32 %v1830, 4294901760
    %v1832 = vsub.f32 %v1830, %v1831
    %v1833 = vand.u32 %v1832, 4294901760
    %1834 = vmatpush1.msra.mxu0 %v1833
    %1835 = vmatprep.subr.mxu0 0.0
    %v1836 = vand.u32 %v103, 4294901760
    %v1837 = vsub.f32 %v103, %v1836
    %v1838 = vand.u32 %v1837, 4294901760
    %v1839 = vsub.f32 %v1837, %v1838
    %v1840 = vand.u32 %v1839, 4294901760
    %1841 = vmatpush1.msra.mxu0 %v1840
    %1842 = vmatprep.subr.mxu0 0.0
    %1843 = vmatpush2.msra.mxu0 0.0
    %1844 = vmatprep.subr.mxu0 0.0
    %1845 = vmatpush2.msra.mxu0 0.0
    %1846 = vmatprep.subr.mxu0 0.0
    %1847 = vmatpush2.msra.mxu0 0.0
    %1848 = vmatprep.subr.mxu0 0.0
    %1849 = vmatpush2.msra.mxu0 0.0
    %1850 = vmatprep.subr.mxu0 0.0
    %1851 = vmatpush2.msra.mxu0 0.0
    %1852 = vmatprep.subr.mxu0 0.0
    %1853 = vmatpush2.msra.mxu0 0.0
    %1854 = vmatprep.subr.mxu0 0.0
    %1855 = vmatpush2.msra.mxu0 0.0
    %1856 = vmatprep.subr.mxu0 0.0
    %1857 = vmatpush2.msra.mxu0 0.0
    %1858 = vmatprep.subr.mxu0 0.0
    %1859 = vmatpush2.msra.mxu0 0.0
    %1860 = vmatprep.subr.mxu0 0.0
    %1861 = vmatpush2.msra.mxu0 0.0
    %1862 = vmatprep.subr.mxu0 0.0
    %1863 = vmatpush2.msra.mxu0 0.0
    %1864 = vmatprep.subr.mxu0 0.0
    %1865 = vmatpush2.msra.mxu0 0.0
    %1866 = vmatprep.subr.mxu0 0.0
    %1867 = vmatpush2.msra.mxu0 0.0
    %1868 = vmatprep.subr.mxu0 0.0
    %1869 = vmatpush2.msra.mxu0 0.0
    %1870 = vmatprep.subr.mxu0 0.0
    %1871 = vmatpush2.msra.mxu0 0.0
    %1872 = vmatprep.subr.mxu0 0.0
    %1873 = vmatpush2.msra.mxu0 0.0
    %1874 = vmatprep.mubr.f32.mxu0 0.0
    %v1875 = vand.u32 %v70, 4294901760
    %1876 = vmatmul.mubr.f32.gmra.mxu0 %v1875
    %v1877 = vpop.f32.mrf.mxu0
    %v1878 = vadd.f32 %v1727, %v1877
    %v1879 = vpop.f32.mrf.mxu0
    %1880 = vdwg.mxu0
    %1881 = vmatprep.subr.mxu0 0.0
    %v1882 = vand.u32 %v118, 4294901760
    %v1883 = vsub.f32 %v118, %v1882
    %1884 = vmatpush1.msra.mxu0 %v1883
    %1885 = vmatprep.subr.mxu0 0.0
    %v1886 = vand.u32 %v117, 4294901760
    %v1887 = vsub.f32 %v117, %v1886
    %1888 = vmatpush1.msra.mxu0 %v1887
    %1889 = vmatprep.subr.mxu0 0.0
    %v1890 = vand.u32 %v116, 4294901760
    %v1891 = vsub.f32 %v116, %v1890
    %1892 = vmatpush1.msra.mxu0 %v1891
    %1893 = vmatprep.subr.mxu0 0.0
    %v1894 = vand.u32 %v115, 4294901760
    %v1895 = vsub.f32 %v115, %v1894
    %1896 = vmatpush1.msra.mxu0 %v1895
    %1897 = vmatprep.subr.mxu0 0.0
    %v1898 = vand.u32 %v114, 4294901760
    %v1899 = vsub.f32 %v114, %v1898
    %1900 = vmatpush1.msra.mxu0 %v1899
    %1901 = vmatprep.subr.mxu0 0.0
    %v1902 = vand.u32 %v113, 4294901760
    %v1903 = vsub.f32 %v113, %v1902
    %1904 = vmatpush1.msra.mxu0 %v1903
    %1905 = vmatprep.subr.mxu0 0.0
    %v1906 = vand.u32 %v112, 4294901760
    %v1907 = vsub.f32 %v112, %v1906
    %1908 = vmatpush1.msra.mxu0 %v1907
    %1909 = vmatprep.subr.mxu0 0.0
    %v1910 = vand.u32 %v111, 4294901760
    %v1911 = vsub.f32 %v111, %v1910
    %1912 = vmatpush1.msra.mxu0 %v1911
    %1913 = vmatprep.subr.mxu0 0.0
    %v1914 = vand.u32 %v110, 4294901760
    %v1915 = vsub.f32 %v110, %v1914
    %1916 = vmatpush1.msra.mxu0 %v1915
    %1917 = vmatprep.subr.mxu0 0.0
    %v1918 = vand.u32 %v109, 4294901760
    %v1919 = vsub.f32 %v109, %v1918
    %1920 = vmatpush1.msra.mxu0 %v1919
    %1921 = vmatprep.subr.mxu0 0.0
    %v1922 = vand.u32 %v108, 4294901760
    %v1923 = vsub.f32 %v108, %v1922
    %1924 = vmatpush1.msra.mxu0 %v1923
    %1925 = vmatprep.subr.mxu0 0.0
    %v1926 = vand.u32 %v107, 4294901760
    %v1927 = vsub.f32 %v107, %v1926
    %1928 = vmatpush1.msra.mxu0 %v1927
    %1929 = vmatprep.subr.mxu0 0.0
    %v1930 = vand.u32 %v106, 4294901760
    %v1931 = vsub.f32 %v106, %v1930
    %1932 = vmatpush1.msra.mxu0 %v1931
    %1933 = vmatprep.subr.mxu0 0.0
    %v1934 = vand.u32 %v105, 4294901760
    %v1935 = vsub.f32 %v105, %v1934
    %1936 = vmatpush1.msra.mxu0 %v1935
    %1937 = vmatprep.subr.mxu0 0.0
    %v1938 = vand.u32 %v104, 4294901760
    %v1939 = vsub.f32 %v104, %v1938
    %1940 = vmatpush1.msra.mxu0 %v1939
    %1941 = vmatprep.subr.mxu0 0.0
    %v1942 = vand.u32 %v103, 4294901760
    %v1943 = vsub.f32 %v103, %v1942
    %1944 = vmatpush1.msra.mxu0 %v1943
    %1945 = vmatprep.subr.mxu0 0.0
    %1946 = vmatpush2.msra.mxu0 0.0
    %1947 = vmatprep.subr.mxu0 0.0
    %1948 = vmatpush2.msra.mxu0 0.0
    %1949 = vmatprep.subr.mxu0 0.0
    %1950 = vmatpush2.msra.mxu0 0.0
    %1951 = vmatprep.subr.mxu0 0.0
    %1952 = vmatpush2.msra.mxu0 0.0
    %1953 = vmatprep.subr.mxu0 0.0
    %1954 = vmatpush2.msra.mxu0 0.0
    %1955 = vmatprep.subr.mxu0 0.0
    %1956 = vmatpush2.msra.mxu0 0.0
    %1957 = vmatprep.subr.mxu0 0.0
    %1958 = vmatpush2.msra.mxu0 0.0
    %1959 = vmatprep.subr.mxu0 0.0
    %1960 = vmatpush2.msra.mxu0 0.0
    %1961 = vmatprep.subr.mxu0 0.0
    %1962 = vmatpush2.msra.mxu0 0.0
    %1963 = vmatprep.subr.mxu0 0.0
    %1964 = vmatpush2.msra.mxu0 0.0
    %1965 = vmatprep.subr.mxu0 0.0
    %1966 = vmatpush2.msra.mxu0 0.0
    %1967 = vmatprep.subr.mxu0 0.0
    %1968 = vmatpush2.msra.mxu0 0.0
    %1969 = vmatprep.subr.mxu0 0.0
    %1970 = vmatpush2.msra.mxu0 0.0
    %1971 = vmatprep.subr.mxu0 0.0
    %1972 = vmatpush2.msra.mxu0 0.0
    %1973 = vmatprep.subr.mxu0 0.0
    %1974 = vmatpush2.msra.mxu0 0.0
    %1975 = vmatprep.subr.mxu0 0.0
    %1976 = vmatpush2.msra.mxu0 0.0
    %1977 = vmatprep.mubr.f32.mxu0 0.0
    %v1978 = vand.u32 %v70, 4294901760
    %v1979 = vsub.f32 %v70, %v1978
    %1980 = vmatmul.mubr.f32.gmra.mxu0 %v1979
    %v1981 = vpop.f32.mrf.mxu0
    %v1982 = vadd.f32 %v1878, %v1981
    %v1983 = vpop.f32.mrf.mxu0
    %1984 = vdwg.mxu0
    %1985 = vmatprep.subr.mxu0 0.0
    %v1986 = vand.u32 %v118, 4294901760
    %1987 = vmatpush1.msra.mxu0 %v1986
    %1988 = vmatprep.subr.mxu0 0.0
    %v1989 = vand.u32 %v117, 4294901760
    %1990 = vmatpush1.msra.mxu0 %v1989
    %1991 = vmatprep.subr.mxu0 0.0
    %v1992 = vand.u32 %v116, 4294901760
    %1993 = vmatpush1.msra.mxu0 %v1992
    %1994 = vmatprep.subr.mxu0 0.0
    %v1995 = vand.u32 %v115, 4294901760
    %1996 = vmatpush1.msra.mxu0 %v1995
    %1997 = vmatprep.subr.mxu0 0.0
    %v1998 = vand.u32 %v114, 4294901760
    %1999 = vmatpush1.msra.mxu0 %v1998
    %2000 = vmatprep.subr.mxu0 0.0
    %v2001 = vand.u32 %v113, 4294901760
    %2002 = vmatpush1.msra.mxu0 %v2001
    %2003 = vmatprep.subr.mxu0 0.0
    %v2004 = vand.u32 %v112, 4294901760
    %2005 = vmatpush1.msra.mxu0 %v2004
    %2006 = vmatprep.subr.mxu0 0.0
    %v2007 = vand.u32 %v111, 4294901760
    %2008 = vmatpush1.msra.mxu0 %v2007
    %2009 = vmatprep.subr.mxu0 0.0
    %v2010 = vand.u32 %v110, 4294901760
    %2011 = vmatpush1.msra.mxu0 %v2010
    %2012 = vmatprep.subr.mxu0 0.0
    %v2013 = vand.u32 %v109, 4294901760
    %2014 = vmatpush1.msra.mxu0 %v2013
    %2015 = vmatprep.subr.mxu0 0.0
    %v2016 = vand.u32 %v108, 4294901760
    %2017 = vmatpush1.msra.mxu0 %v2016
    %2018 = vmatprep.subr.mxu0 0.0
    %v2019 = vand.u32 %v107, 4294901760
    %2020 = vmatpush1.msra.mxu0 %v2019
    %2021 = vmatprep.subr.mxu0 0.0
    %v2022 = vand.u32 %v106, 4294901760
    %2023 = vmatpush1.msra.mxu0 %v2022
    %2024 = vmatprep.subr.mxu0 0.0
    %v2025 = vand.u32 %v105, 4294901760
    %2026 = vmatpush1.msra.mxu0 %v2025
    %2027 = vmatprep.subr.mxu0 0.0
    %v2028 = vand.u32 %v104, 4294901760
    %2029 = vmatpush1.msra.mxu0 %v2028
    %2030 = vmatprep.subr.mxu0 0.0
    %v2031 = vand.u32 %v103, 4294901760
    %2032 = vmatpush1.msra.mxu0 %v2031
    %2033 = vmatprep.subr.mxu0 0.0
    %2034 = vmatpush2.msra.mxu0 0.0
    %2035 = vmatprep.subr.mxu0 0.0
    %2036 = vmatpush2.msra.mxu0 0.0
    %2037 = vmatprep.subr.mxu0 0.0
    %2038 = vmatpush2.msra.mxu0 0.0
    %2039 = vmatprep.subr.mxu0 0.0
    %2040 = vmatpush2.msra.mxu0 0.0
    %2041 = vmatprep.subr.mxu0 0.0
    %2042 = vmatpush2.msra.mxu0 0.0
    %2043 = vmatprep.subr.mxu0 0.0
    %2044 = vmatpush2.msra.mxu0 0.0
    %2045 = vmatprep.subr.mxu0 0.0
    %2046 = vmatpush2.msra.mxu0 0.0
    %2047 = vmatprep.subr.mxu0 0.0
    %2048 = vmatpush2.msra.mxu0 0.0
    %2049 = vmatprep.subr.mxu0 0.0
    %2050 = vmatpush2.msra.mxu0 0.0
    %2051 = vmatprep.subr.mxu0 0.0
    %2052 = vmatpush2.msra.mxu0 0.0
    %2053 = vmatprep.subr.mxu0 0.0
    %2054 = vmatpush2.msra.mxu0 0.0
    %2055 = vmatprep.subr.mxu0 0.0
    %2056 = vmatpush2.msra.mxu0 0.0
    %2057 = vmatprep.subr.mxu0 0.0
    %2058 = vmatpush2.msra.mxu0 0.0
    %2059 = vmatprep.subr.mxu0 0.0
    %2060 = vmatpush2.msra.mxu0 0.0
    %2061 = vmatprep.subr.mxu0 0.0
    %2062 = vmatpush2.msra.mxu0 0.0
    %2063 = vmatprep.subr.mxu0 0.0
    %2064 = vmatpush2.msra.mxu0 0.0
    %2065 = vmatprep.mubr.f32.mxu0 0.0
    %v2066 = vand.u32 %v70, 4294901760
    %v2067 = vsub.f32 %v70, %v2066
    %v2068 = vand.u32 %v2067, 4294901760
    %2069 = vmatmul.mubr.f32.gmra.mxu0 %v2068
    %v2070 = vpop.f32.mrf.mxu0
    %v2071 = vadd.f32 %v1982, %v2070
    %v2072 = vpop.f32.mrf.mxu0
    %2073 = vdwg.mxu0
    %2074 = vmatprep.subr.mxu0 0.0
    %v2075 = vand.u32 %v118, 4294901760
    %v2076 = vsub.f32 %v118, %v2075
    %v2077 = vand.u32 %v2076, 4294901760
    %2078 = vmatpush1.msra.mxu0 %v2077
    %2079 = vmatprep.subr.mxu0 0.0
    %v2080 = vand.u32 %v117, 4294901760
    %v2081 = vsub.f32 %v117, %v2080
    %v2082 = vand.u32 %v2081, 4294901760
    %2083 = vmatpush1.msra.mxu0 %v2082
    %2084 = vmatprep.subr.mxu0 0.0
    %v2085 = vand.u32 %v116, 4294901760
    %v2086 = vsub.f32 %v116, %v2085
    %v2087 = vand.u32 %v2086, 4294901760
    %2088 = vmatpush1.msra.mxu0 %v2087
    %2089 = vmatprep.subr.mxu0 0.0
    %v2090 = vand.u32 %v115, 4294901760
    %v2091 = vsub.f32 %v115, %v2090
    %v2092 = vand.u32 %v2091, 4294901760
    %2093 = vmatpush1.msra.mxu0 %v2092
    %2094 = vmatprep.subr.mxu0 0.0
    %v2095 = vand.u32 %v114, 4294901760
    %v2096 = vsub.f32 %v114, %v2095
    %v2097 = vand.u32 %v2096, 4294901760
    %2098 = vmatpush1.msra.mxu0 %v2097
    %2099 = vmatprep.subr.mxu0 0.0
    %v2100 = vand.u32 %v113, 4294901760
    %v2101 = vsub.f32 %v113, %v2100
    %v2102 = vand.u32 %v2101, 4294901760
    %2103 = vmatpush1.msra.mxu0 %v2102
    %2104 = vmatprep.subr.mxu0 0.0
    %v2105 = vand.u32 %v112, 4294901760
    %v2106 = vsub.f32 %v112, %v2105
    %v2107 = vand.u32 %v2106, 4294901760
    %2108 = vmatpush1.msra.mxu0 %v2107
    %2109 = vmatprep.subr.mxu0 0.0
    %v2110 = vand.u32 %v111, 4294901760
    %v2111 = vsub.f32 %v111, %v2110
    %v2112 = vand.u32 %v2111, 4294901760
    %2113 = vmatpush1.msra.mxu0 %v2112
    %2114 = vmatprep.subr.mxu0 0.0
    %v2115 = vand.u32 %v110, 4294901760
    %v2116 = vsub.f32 %v110, %v2115
    %v2117 = vand.u32 %v2116, 4294901760
    %2118 = vmatpush1.msra.mxu0 %v2117
    %2119 = vmatprep.subr.mxu0 0.0
    %v2120 = vand.u32 %v109, 4294901760
    %v2121 = vsub.f32 %v109, %v2120
    %v2122 = vand.u32 %v2121, 4294901760
    %2123 = vmatpush1.msra.mxu0 %v2122
    %2124 = vmatprep.subr.mxu0 0.0
    %v2125 = vand.u32 %v108, 4294901760
    %v2126 = vsub.f32 %v108, %v2125
    %v2127 = vand.u32 %v2126, 4294901760
    %2128 = vmatpush1.msra.mxu0 %v2127
    %2129 = vmatprep.subr.mxu0 0.0
    %v2130 = vand.u32 %v107, 4294901760
    %v2131 = vsub.f32 %v107, %v2130
    %v2132 = vand.u32 %v2131, 4294901760
    %2133 = vmatpush1.msra.mxu0 %v2132
    %2134 = vmatprep.subr.mxu0 0.0
    %v2135 = vand.u32 %v106, 4294901760
    %v2136 = vsub.f32 %v106, %v2135
    %v2137 = vand.u32 %v2136, 4294901760
    %2138 = vmatpush1.msra.mxu0 %v2137
    %2139 = vmatprep.subr.mxu0 0.0
    %v2140 = vand.u32 %v105, 4294901760
    %v2141 = vsub.f32 %v105, %v2140
    %v2142 = vand.u32 %v2141, 4294901760
    %2143 = vmatpush1.msra.mxu0 %v2142
    %2144 = vmatprep.subr.mxu0 0.0
    %v2145 = vand.u32 %v104, 4294901760
    %v2146 = vsub.f32 %v104, %v2145
    %v2147 = vand.u32 %v2146, 4294901760
    %2148 = vmatpush1.msra.mxu0 %v2147
    %2149 = vmatprep.subr.mxu0 0.0
    %v2150 = vand.u32 %v103, 4294901760
    %v2151 = vsub.f32 %v103, %v2150
    %v2152 = vand.u32 %v2151, 4294901760
    %2153 = vmatpush1.msra.mxu0 %v2152
    %2154 = vmatprep.subr.mxu0 0.0
    %2155 = vmatpush2.msra.mxu0 0.0
    %2156 = vmatprep.subr.mxu0 0.0
    %2157 = vmatpush2.msra.mxu0 0.0
    %2158 = vmatprep.subr.mxu0 0.0
    %2159 = vmatpush2.msra.mxu0 0.0
    %2160 = vmatprep.subr.mxu0 0.0
    %2161 = vmatpush2.msra.mxu0 0.0
    %2162 = vmatprep.subr.mxu0 0.0
    %2163 = vmatpush2.msra.mxu0 0.0
    %2164 = vmatprep.subr.mxu0 0.0
    %2165 = vmatpush2.msra.mxu0 0.0
    %2166 = vmatprep.subr.mxu0 0.0
    %2167 = vmatpush2.msra.mxu0 0.0
    %2168 = vmatprep.subr.mxu0 0.0
    %2169 = vmatpush2.msra.mxu0 0.0
    %2170 = vmatprep.subr.mxu0 0.0
    %2171 = vmatpush2.msra.mxu0 0.0
    %2172 = vmatprep.subr.mxu0 0.0
    %2173 = vmatpush2.msra.mxu0 0.0
    %2174 = vmatprep.subr.mxu0 0.0
    %2175 = vmatpush2.msra.mxu0 0.0
    %2176 = vmatprep.subr.mxu0 0.0
    %2177 = vmatpush2.msra.mxu0 0.0
    %2178 = vmatprep.subr.mxu0 0.0
    %2179 = vmatpush2.msra.mxu0 0.0
    %2180 = vmatprep.subr.mxu0 0.0
    %2181 = vmatpush2.msra.mxu0 0.0
    %2182 = vmatprep.subr.mxu0 0.0
    %2183 = vmatpush2.msra.mxu0 0.0
    %2184 = vmatprep.subr.mxu0 0.0
    %2185 = vmatpush2.msra.mxu0 0.0
    %2186 = vmatprep.mubr.f32.mxu0 0.0
    %v2187 = vand.u32 %v70, 4294901760
    %2188 = vmatmul.mubr.f32.gmra.mxu0 %v2187
    %v2189 = vpop.f32.mrf.mxu0
    %v2190 = vadd.f32 %v2071, %v2189
    %v2191 = vpop.f32.mrf.mxu0
    %2192 = vdwg.mxu0
    %2193 = vmatprep.subr.mxu0 0.0
    %v2194 = vand.u32 %v118, 4294901760
    %2195 = vmatpush1.msra.mxu0 %v2194
    %2196 = vmatprep.subr.mxu0 0.0
    %v2197 = vand.u32 %v117, 4294901760
    %2198 = vmatpush1.msra.mxu0 %v2197
    %2199 = vmatprep.subr.mxu0 0.0
    %v2200 = vand.u32 %v116, 4294901760
    %2201 = vmatpush1.msra.mxu0 %v2200
    %2202 = vmatprep.subr.mxu0 0.0
    %v2203 = vand.u32 %v115, 4294901760
    %2204 = vmatpush1.msra.mxu0 %v2203
    %2205 = vmatprep.subr.mxu0 0.0
    %v2206 = vand.u32 %v114, 4294901760
    %2207 = vmatpush1.msra.mxu0 %v2206
    %2208 = vmatprep.subr.mxu0 0.0
    %v2209 = vand.u32 %v113, 4294901760
    %2210 = vmatpush1.msra.mxu0 %v2209
    %2211 = vmatprep.subr.mxu0 0.0
    %v2212 = vand.u32 %v112, 4294901760
    %2213 = vmatpush1.msra.mxu0 %v2212
    %2214 = vmatprep.subr.mxu0 0.0
    %v2215 = vand.u32 %v111, 4294901760
    %2216 = vmatpush1.msra.mxu0 %v2215
    %2217 = vmatprep.subr.mxu0 0.0
    %v2218 = vand.u32 %v110, 4294901760
    %2219 = vmatpush1.msra.mxu0 %v2218
    %2220 = vmatprep.subr.mxu0 0.0
    %v2221 = vand.u32 %v109, 4294901760
    %2222 = vmatpush1.msra.mxu0 %v2221
    %2223 = vmatprep.subr.mxu0 0.0
    %v2224 = vand.u32 %v108, 4294901760
    %2225 = vmatpush1.msra.mxu0 %v2224
    %2226 = vmatprep.subr.mxu0 0.0
    %v2227 = vand.u32 %v107, 4294901760
    %2228 = vmatpush1.msra.mxu0 %v2227
    %2229 = vmatprep.subr.mxu0 0.0
    %v2230 = vand.u32 %v106, 4294901760
    %2231 = vmatpush1.msra.mxu0 %v2230
    %2232 = vmatprep.subr.mxu0 0.0
    %v2233 = vand.u32 %v105, 4294901760
    %2234 = vmatpush1.msra.mxu0 %v2233
    %2235 = vmatprep.subr.mxu0 0.0
    %v2236 = vand.u32 %v104, 4294901760
    %2237 = vmatpush1.msra.mxu0 %v2236
    %2238 = vmatprep.subr.mxu0 0.0
    %v2239 = vand.u32 %v103, 4294901760
    %2240 = vmatpush1.msra.mxu0 %v2239
    %2241 = vmatprep.subr.mxu0 0.0
    %2242 = vmatpush2.msra.mxu0 0.0
    %2243 = vmatprep.subr.mxu0 0.0
    %2244 = vmatpush2.msra.mxu0 0.0
    %2245 = vmatprep.subr.mxu0 0.0
    %2246 = vmatpush2.msra.mxu0 0.0
    %2247 = vmatprep.subr.mxu0 0.0
    %2248 = vmatpush2.msra.mxu0 0.0
    %2249 = vmatprep.subr.mxu0 0.0
    %2250 = vmatpush2.msra.mxu0 0.0
    %2251 = vmatprep.subr.mxu0 0.0
    %2252 = vmatpush2.msra.mxu0 0.0
    %2253 = vmatprep.subr.mxu0 0.0
    %2254 = vmatpush2.msra.mxu0 0.0
    %2255 = vmatprep.subr.mxu0 0.0
    %2256 = vmatpush2.msra.mxu0 0.0
    %2257 = vmatprep.subr.mxu0 0.0
    %2258 = vmatpush2.msra.mxu0 0.0
    %2259 = vmatprep.subr.mxu0 0.0
    %2260 = vmatpush2.msra.mxu0 0.0
    %2261 = vmatprep.subr.mxu0 0.0
    %2262 = vmatpush2.msra.mxu0 0.0
    %2263 = vmatprep.subr.mxu0 0.0
    %2264 = vmatpush2.msra.mxu0 0.0
    %2265 = vmatprep.subr.mxu0 0.0
    %2266 = vmatpush2.msra.mxu0 0.0
    %2267 = vmatprep.subr.mxu0 0.0
    %2268 = vmatpush2.msra.mxu0 0.0
    %2269 = vmatprep.subr.mxu0 0.0
    %2270 = vmatpush2.msra.mxu0 0.0
    %2271 = vmatprep.subr.mxu0 0.0
    %2272 = vmatpush2.msra.mxu0 0.0
    %2273 = vmatprep.mubr.f32.mxu0 0.0
    %v2274 = vand.u32 %v70, 4294901760
    %2275 = vmatmul.mubr.f32.gmra.mxu0 %v2274
    %v2276 = vpop.f32.mrf.mxu0
    %v2277 = vadd.f32 %v2190, %v2276
    %v2278 = vpop.f32.mrf.mxu0
    %2279 = vdwg.mxu0
    %2280 = vst [vmem:[#allocation7] sm:$0xff] %v2277
    // Predicated region
    $region26: #{_resample_48k_to_16k.1} parent=1 // pred_check
      _
    $region27: #{_resample_48k_to_16k.1} parent=1 // pred_check_branch
      %2282 = sbr.rel (0) target = $region29
    $region28: #{_resample_48k_to_16k.1} parent=1 // pred_region
      %s2284 = ssub.s32 128, 128
      %2285 = vsyncadd [#allocation4], %s2284
      %s2287 = sshll.u32 [#allocation7], 4
      %s2288 = int_to_ptr.vmem [resolvable:$true] %s2287
      %2290 = dma.vmem_to_hbm [thread:$0]  %s2288, 128, %s4, [#allocation4]
    $region29: #{_resample_48k_to_16k.1} parent=1 // pred_fallthru
      _
    // Predicated region
    $region30: #{_resample_48k_to_16k.1} parent=1 // pred_check
      _
    $region31: #{_resample_48k_to_16k.1} parent=1 // pred_check_branch
      %2292 = sbr.rel (0) target = $region33
    $region32: #{_resample_48k_to_16k.1} parent=1 // pred_region
      %2293 = dma.done [#allocation4], 128
    $region33: #{_resample_48k_to_16k.1} parent=1 // pred_fallthru
      _
    %2294 = vsyncpa [#allocation3], 1
    %2295 = vsyncpa [#allocation6], 1
    %2296 = vsyncpa [#allocation4], 1

</llo_original>
